<compile_context>
chip_gen: v6e
topology: v6e:2x2x1
jax: 0.10.0
libtpu: 0.0.40
codegen_flags: <defaults>
</compile_context>

<pallas_src>
import numpy as np
import jax
import jax.numpy as jnp
from jax.experimental import pallas as pl
from jax.experimental.pallas import tpu as pltpu

LANES = 128   # padded lane width for conv activations / logits
TB = 8        # images per grid step (one output sublane of logits per image)


# ----------------------------------------------------------- param re-layout ---
# One-time, host-side (numpy) transforms of torch-layout parameters into
# MXU-friendly matrices.  Not part of the forward pass.

def _conv_tap_weights(w, in_row_lanes, out_width, stride, out_lanes):
    """torch conv weight (OC, IC, KH, KW) -> (KH*in_row_lanes, out_lanes) so that
    concat_ki(row slices shifted by ki) @ W == conv output rows
    (channels-last lanes: col = ow*OC + oc, row = ki*in_row_lanes + wi*IC + ic)."""
    w = np.asarray(w, np.float32)
    OC, IC, KH, KW = w.shape
    mat = np.zeros((KH * in_row_lanes, out_lanes), np.float32)
    for ki in range(KH):
        for kj in range(KW):
            for ow in range(out_width):
                wi = ow * stride + kj
                r0 = ki * in_row_lanes + wi * IC
                assert r0 + IC <= (ki + 1) * in_row_lanes
                assert (ow + 1) * OC <= out_lanes
                mat[r0:r0 + IC, ow * OC:(ow + 1) * OC] = w[:, :, ki, kj].T
    return jnp.asarray(mat)


def _conv_row_bias(b, out_width, out_lanes):
    b = np.asarray(b, np.float32)
    t = np.zeros((1, out_lanes), np.float32)
    t[0, :out_width * b.shape[0]] = np.tile(b, out_width)   # col = ow*OC + oc
    return jnp.asarray(t)


def _linear_row_weights(lin_w, lin_b, OH, OW, C, pad_in, pad_out):
    """torch Linear (LOUT, C*OH*OW) -> (OH, pad_in, pad_out) so the channels-last
    row layout act[h, w*C + c] contracts to the torch NCHW .view(N,-1) result."""
    lin_w = np.asarray(lin_w, np.float32)
    LOUT = lin_w.shape[0]
    w4 = lin_w.reshape(LOUT, C, OH, OW)                      # torch flatten order
    perm = np.transpose(w4, (2, 3, 1, 0)).reshape(OH, OW * C, LOUT)
    wl = np.zeros((OH, pad_in, pad_out), np.float32)
    wl[:, :OW * C, :LOUT] = perm
    bl = np.zeros((1, pad_out), np.float32)
    bl[0, :LOUT] = np.asarray(lin_b, np.float32)
    return jnp.asarray(wl), jnp.asarray(bl)


# -------------------------------------------------------------- fused kernel ---

def make_fused_forward(params, *, k, in_ch, out_ch, s, lin_out, N, H, W):
    C1, C2, C3 = in_ch[0], out_ch[0], out_ch[1]
    assert in_ch[1] == C2
    k1, k2 = k
    s1, s2 = s
    OH1, OW1 = (H - k1) // s1 + 1, (W - k1) // s1 + 1
    OH2, OW2 = (OH1 - k2) // s2 + 1, (OW1 - k2) // s2 + 1
    WC1 = W * C1
    # every row width fits one 128-lane tile at these sizes
    assert max(WC1, OW1 * C2, OW2 * C3, lin_out) <= LANES
    assert s1 == 1 and s2 == 1, "row-shift im2col below assumes stride 1"
    # TODO(synk): stride > 1 needs group-strided row selection; not exercised by the spec config.

    NB = -(-N // TB)            # grid steps
    NPAD = NB * TB

    # --- one-time weight re-layout (host numpy) ---
    w1 = _conv_tap_weights(params["conv1_w"], WC1,   OW1, s1, LANES)   # (k1*64, 128)
    b1 = _conv_row_bias(params["conv1_b"], OW1, LANES)                 # (1, 128)
    w2 = _conv_tap_weights(params["conv2_w"], LANES, OW2, s2, LANES)   # (k2*128, 128)
    b2 = _conv_row_bias(params["conv2_b"], OW2, LANES)                 # (1, 128)
    wl, bl = _linear_row_weights(params["lin_w"], params["lin_b"],
                                 OH2, OW2, C3, LANES, LANES)           # (OH2,128,128)

    def kernel(x_ref, w1_ref, b1_ref, w2_ref, b2_ref, wl_ref, bl_ref, o_ref,
               act1_s, act2_s):
        # x rows are (h, b)-interleaved: row h*TB + b = image b of this tile,
        # height h, channels-last lanes w*C1 + c.
        x2d = x_ref[0]                                                 # (H*TB, W*C1)

        # ---- conv1: fuse the k1 taps into one K = k1*W*C1 contraction ----
        im1 = jnp.concatenate(
            [x2d[ki * TB:(ki + OH1) * TB, :] for ki in range(k1)], axis=1)   # (OH1*TB, k1*WC1)
        act1_s[...] = (jnp.dot(im1, w1_ref[...],
                               preferred_element_type=jnp.float32)
                       + b1_ref[...])                                  # (OH1*TB, 128)

        # ---- conv2: fused taps, lane-tile-aligned concat, K = k2*128 ----
        im2 = jnp.concatenate(
            [act1_s[pl.ds(ki * TB, OH2 * TB), :] for ki in range(k2)], axis=1)  # (OH2*TB, k2*128)
        act2_s[...] = (jnp.dot(im2, w2_ref[...],
                               preferred_element_type=jnp.float32)
                       + b2_ref[...])                                  # (OH2*TB, 128)

        # ---- flatten + Linear: one batched contraction over (h, k) ----
        act2 = act2_s[...].reshape(OH2, TB, LANES)         # sublane-aligned split (free)
        part = jnp.einsum('hbk,hko->hbo', act2, wl_ref[...],
                          preferred_element_type=jnp.float32)          # (OH2, TB, 128)
        y = jnp.sum(part, axis=0) + bl_ref[...]                        # (TB, 128)

        # ---- ReLU + LogSoftmax over the real lin_out logits (pad masked) ----
        y = jnp.maximum(y, 0.0)
        lane = jax.lax.broadcasted_iota(jnp.int32, (TB, LANES), 1)
        mask = lane < lin_out
        ym = jnp.where(mask, y, -1e30)
        m = jnp.max(ym, axis=1, keepdims=True)
        lse = jnp.log(jnp.sum(jnp.exp(ym - m), axis=1, keepdims=True))
        o_ref[...] = jnp.where(mask, y - m - lse, 0.0)                 # (TB, 128)

    grid_spec = pltpu.PrefetchScalarGridSpec(
        num_scalar_prefetch=0,
        grid=(NB,),
        in_specs=[
            pl.BlockSpec((1, H * TB, WC1), lambda n: (n, 0, 0)),       # x tile (no lane pad)
            pl.BlockSpec((k1 * WC1, LANES), lambda n: (0, 0)),         # conv1 W (stacked taps)
            pl.BlockSpec((1, LANES), lambda n: (0, 0)),                # conv1 b
            pl.BlockSpec((k2 * LANES, LANES), lambda n: (0, 0)),       # conv2 W (stacked taps)
            pl.BlockSpec((1, LANES), lambda n: (0, 0)),                # conv2 b
            pl.BlockSpec((OH2, LANES, LANES), lambda n: (0, 0, 0)),    # linear W
            pl.BlockSpec((1, LANES), lambda n: (0, 0)),                # linear b
        ],
        out_specs=pl.BlockSpec((TB, LANES), lambda n: (n, 0)),         # dense (8,128) block
        scratch_shapes=[
            pltpu.VMEM((OH1 * TB, LANES), jnp.float32),                # act1 staging
            pltpu.VMEM((OH2 * TB, LANES), jnp.float32),                # act2 staging
        ],
    )

    flops_per_step = 2 * (OH1 * TB * (k1 * WC1) * LANES
                          + OH2 * TB * (k2 * LANES) * LANES
                          + OH2 * TB * LANES * LANES)
    bytes_per_step = 4 * (H * TB * WC1
                          + (k1 * WC1 + k2 * LANES + 3) * LANES
                          + OH2 * LANES * LANES
                          + TB * LANES)
    cost = pl.CostEstimate(flops=NB * flops_per_step,
                           transcendentals=NB * (TB * LANES + TB),
                           bytes_accessed=NB * bytes_per_step)

    fused = pl.pallas_call(
        kernel,
        out_shape=jax.ShapeDtypeStruct((NPAD, LANES), jnp.float32),
        grid_spec=grid_spec,
        compiler_params=pltpu.CompilerParams(
            dimension_semantics=("parallel",)),     # batch tiles shard across TCs
        cost_estimate=cost,
    )

    @jax.jit
    def forward(x):
        # NCHW -> (grid, h*TB + b, W*C1): channels-last rows with the batch
        # folded into the sublane dimension.  No lane padding of the input.
        xp = jnp.pad(x, ((0, NPAD - N), (0, 0), (0, 0), (0, 0)))
        xr = jnp.transpose(xp, (0, 2, 3, 1)).reshape(NPAD, H, WC1)
        xr = xr.reshape(NB, TB, H, WC1).transpose(0, 2, 1, 3).reshape(NB, H * TB, WC1)
        out = fused(xr, w1, b1, w2, b2, wl, bl)                        # (NPAD, 128)
        return out[:N, :lin_out]

    return forward


# ------------------------------------------------------- pure-JAX reference ---

def _reference(x, params):
    def conv(x, w, b, stride):
        y = jax.lax.conv_general_dilated(
            x, w, window_strides=(stride, stride), padding="VALID",
            dimension_numbers=("NCHW", "OIHW", "NCHW"))
        return y + b.reshape(1, -1, 1, 1)
    out = conv(x, params["conv1_w"], params["conv1_b"], params["s"][0])
    out = conv(out, params["conv2_w"], params["conv2_b"], params["s"][1])
    out = out.reshape(out.shape[0], -1)
    out = out @ params["lin_w"].T + params["lin_b"]
    out = jnp.maximum(out, 0.0)
    return jax.nn.log_softmax(out, axis=1)


# ------------------------------------------------------------------- main ---

if __name__ == "__main__":
    # Module hyper-params: k=(3,3), in_ch=(4,8), out_ch=(8,4), s=(1,1)
    # x: (2,4,16,16) -> conv1 -> (2,8,14,14) -> conv2 -> (2,4,12,12)
    # flatten -> (2, 576) -> Linear(576, 10) -> ReLU -> LogSoftmax
    k, in_ch, out_ch, s = (3, 3), (4, 8), (8, 4), (1, 1)
    N, H, W = 2, 16, 16
    OH1 = (H - k[0]) // s[0] + 1
    OH2 = (OH1 - k[1]) // s[1] + 1
    lin_in, lin_out = out_ch[1] * OH2 * OH2, 10

    key = jax.random.PRNGKey(0)
    k1_, k2_, k3_, k4_, k5_, k6_, k7_ = jax.random.split(key, 7)

    params = {
        "conv1_w": 0.1 * jax.random.normal(k1_, (out_ch[0], in_ch[0], k[0], k[0]), jnp.float32),
        "conv1_b": 0.1 * jax.random.normal(k2_, (out_ch[0],), jnp.float32),
        "conv2_w": 0.1 * jax.random.normal(k3_, (out_ch[1], in_ch[1], k[1], k[1]), jnp.float32),
        "conv2_b": 0.1 * jax.random.normal(k4_, (out_ch[1],), jnp.float32),
        "lin_w":   0.05 * jax.random.normal(k5_, (lin_out, lin_in), jnp.float32),
        "lin_b":   0.05 * jax.random.normal(k6_, (lin_out,), jnp.float32),
        "s": s,
    }
    x = jax.random.normal(k7_, (N, in_ch[0], H, W), jnp.float32)

    forward = make_fused_forward(params, k=k, in_ch=in_ch, out_ch=out_ch, s=s,
                                 lin_out=lin_out, N=N, H=H, W=W)

    out = jax.block_until_ready(forward(x))
    ref = jax.block_until_ready(_reference(x, params))

    assert out.shape == (N, lin_out), out.shape
    err = float(jnp.max(jnp.abs(out - ref)))
    assert jnp.allclose(out, ref, rtol=1e-4, atol=1e-4), f"max abs diff {err:e}"

    print("KERNEL_OK")
</pallas_src>

<mosaic_0001>
module attributes {stable_mosaic.version = 11 : i64} {
  func.func @kernel(%arg0: i32, %arg1: memref<1x128x64xf32, #tpu.memory_space<vmem>>, %arg2: memref<192x128xf32, #tpu.memory_space<vmem>>, %arg3: memref<1x128xf32, #tpu.memory_space<vmem>>, %arg4: memref<384x128xf32, #tpu.memory_space<vmem>>, %arg5: memref<1x128xf32, #tpu.memory_space<vmem>>, %arg6: memref<12x128x128xf32, #tpu.memory_space<vmem>>, %arg7: memref<1x128xf32, #tpu.memory_space<vmem>>, %arg8: memref<8x128xf32, #tpu.memory_space<vmem>>, %arg9: memref<112x128xf32, #tpu.memory_space<vmem>>, %arg10: memref<96x128xf32, #tpu.memory_space<vmem>>) attributes {dimension_semantics = [#tpu.dimension_semantics<parallel>], iteration_bounds = array<i64: 1>, scalar_prefetch = 0 : i64, scratch_operands = 2 : i64, tpu.core_type = #tpu.core_type<tc>, window_params = [{transform_indices = @transform_0, window_bounds = array<i64: 1, 128, 64>}, {pipeline_mode = #tpu.pipeline_mode<synchronous>, transform_indices = @transform_1, window_bounds = array<i64: 192, 128>}, {pipeline_mode = #tpu.pipeline_mode<synchronous>, transform_indices = @transform_2, window_bounds = array<i64: 1, 128>}, {pipeline_mode = #tpu.pipeline_mode<synchronous>, transform_indices = @transform_3, window_bounds = array<i64: 384, 128>}, {pipeline_mode = #tpu.pipeline_mode<synchronous>, transform_indices = @transform_4, window_bounds = array<i64: 1, 128>}, {pipeline_mode = #tpu.pipeline_mode<synchronous>, transform_indices = @transform_5, window_bounds = array<i64: 12, 128, 128>}, {pipeline_mode = #tpu.pipeline_mode<synchronous>, transform_indices = @transform_6, window_bounds = array<i64: 1, 128>}, {transform_indices = @transform_7, window_bounds = array<i64: 8, 128>}]} {
    %c0 = arith.constant 0 : index
    %c0_0 = arith.constant 0 : index
    %c0_1 = arith.constant 0 : index
    %0 = vector.load %arg1[%c0, %c0_0, %c0_1] : memref<1x128x64xf32, #tpu.memory_space<vmem>>, vector<1x128x64xf32>
    %1 = vector.shape_cast %0 : vector<1x128x64xf32> to vector<128x64xf32>
    %2 = vector.extract_strided_slice %1 {offsets = [0, 0], sizes = [112, 64], strides = [1, 1]} : vector<128x64xf32> to vector<112x64xf32>
    %3 = vector.extract_strided_slice %1 {offsets = [8, 0], sizes = [112, 64], strides = [1, 1]} : vector<128x64xf32> to vector<112x64xf32>
    %4 = vector.extract_strided_slice %1 {offsets = [16, 0], sizes = [112, 64], strides = [1, 1]} : vector<128x64xf32> to vector<112x64xf32>
    %5 = tpu.concatenate %2, %3, %4 in 1 : vector<112x64xf32>, vector<112x64xf32>, vector<112x64xf32> -> vector<112x192xf32>
    %c0_2 = arith.constant 0 : index
    %c0_3 = arith.constant 0 : index
    %6 = vector.load %arg2[%c0_2, %c0_3] : memref<192x128xf32, #tpu.memory_space<vmem>>, vector<192x128xf32>
    %cst = arith.constant dense<0.000000e+00> : vector<112x128xf32>
    %7 = tpu.matmul %5, %6, %cst {dimension_numbers = #tpu.dot_dimension_numbers<[1], [0], [0], [1], [0, 0, 1, 1], [], []>} : vector<112x192xf32>, vector<192x128xf32>, vector<112x128xf32> -> vector<112x128xf32>
    %c0_4 = arith.constant 0 : index
    %c0_5 = arith.constant 0 : index
    %8 = vector.load %arg3[%c0_4, %c0_5] : memref<1x128xf32, #tpu.memory_space<vmem>>, vector<1x128xf32>
    %9 = vector.broadcast %8 : vector<1x128xf32> to vector<112x128xf32>
    %10 = arith.addf %7, %9 : vector<112x128xf32>
    %c0_6 = arith.constant 0 : index
    %c0_7 = arith.constant 0 : index
    %11 = vector.load %arg9[%c0_6, %c0_7] : memref<112x128xf32, #tpu.memory_space<vmem>>, vector<112x128xf32>
    tpu.vector_store %arg9[%c0_6, %c0_7], %10 {strides = array<i32>} : memref<112x128xf32, #tpu.memory_space<vmem>>, vector<112x128xf32>,
    %c0_8 = arith.constant 0 : index
    %c0_9 = arith.constant 0 : index
    %12 = vector.load %arg9[%c0_8, %c0_9] : memref<112x128xf32, #tpu.memory_space<vmem>>, vector<96x128xf32>
    %c8 = arith.constant 8 : index
    %c0_10 = arith.constant 0 : index
    %13 = vector.load %arg9[%c8, %c0_10] : memref<112x128xf32, #tpu.memory_space<vmem>>, vector<96x128xf32>
    %c16 = arith.constant 16 : index
    %c0_11 = arith.constant 0 : index
    %14 = vector.load %arg9[%c16, %c0_11] : memref<112x128xf32, #tpu.memory_space<vmem>>, vector<96x128xf32>
    %15 = tpu.concatenate %12, %13, %14 in 1 : vector<96x128xf32>, vector<96x128xf32>, vector<96x128xf32> -> vector<96x384xf32>
    %c0_12 = arith.constant 0 : index
    %c0_13 = arith.constant 0 : index
    %16 = vector.load %arg4[%c0_12, %c0_13] : memref<384x128xf32, #tpu.memory_space<vmem>>, vector<384x128xf32>
    %cst_14 = arith.constant dense<0.000000e+00> : vector<96x128xf32>
    %17 = tpu.matmul %15, %16, %cst_14 {dimension_numbers = #tpu.dot_dimension_numbers<[1], [0], [0], [1], [0, 0, 1, 1], [], []>} : vector<96x384xf32>, vector<384x128xf32>, vector<96x128xf32> -> vector<96x128xf32>
    %c0_15 = arith.constant 0 : index
    %c0_16 = arith.constant 0 : index
    %18 = vector.load %arg5[%c0_15, %c0_16] : memref<1x128xf32, #tpu.memory_space<vmem>>, vector<1x128xf32>
    %19 = vector.broadcast %18 : vector<1x128xf32> to vector<96x128xf32>
    %20 = arith.addf %17, %19 : vector<96x128xf32>
    %c0_17 = arith.constant 0 : index
    %c0_18 = arith.constant 0 : index
    %21 = vector.load %arg10[%c0_17, %c0_18] : memref<96x128xf32, #tpu.memory_space<vmem>>, vector<96x128xf32>
    tpu.vector_store %arg10[%c0_17, %c0_18], %20 {strides = array<i32>} : memref<96x128xf32, #tpu.memory_space<vmem>>, vector<96x128xf32>,
    %c0_19 = arith.constant 0 : index
    %c0_20 = arith.constant 0 : index
    %22 = vector.load %arg10[%c0_19, %c0_20] : memref<96x128xf32, #tpu.memory_space<vmem>>, vector<96x128xf32>
    %23 = vector.shape_cast %22 : vector<96x128xf32> to vector<12x8x128xf32>
    %c0_21 = arith.constant 0 : index
    %c0_22 = arith.constant 0 : index
    %c0_23 = arith.constant 0 : index
    %24 = vector.load %arg6[%c0_21, %c0_22, %c0_23] : memref<12x128x128xf32, #tpu.memory_space<vmem>>, vector<12x128x128xf32>
    "tpu.trace_start"() <{level = 10 : i32, message = "hbk,hko->hbo"}> : () -> ()
    %cst_24 = arith.constant dense<0.000000e+00> : vector<12x8x128xf32>
    %25 = tpu.matmul %23, %24, %cst_24 {dimension_numbers = #tpu.dot_dimension_numbers<[2], [1], [1], [2], [0, 0, 0, 1, 1, 2], [0], [0]>} : vector<12x8x128xf32>, vector<12x128x128xf32>, vector<12x8x128xf32> -> vector<12x8x128xf32>
    "tpu.trace_stop"() : () -> ()
    %cst_25 = arith.constant dense<0.000000e+00> : vector<8x128xf32>
    %26 = vector.multi_reduction <add>, %25, %cst_25 [0] : vector<12x8x128xf32> to vector<8x128xf32>
    %c0_26 = arith.constant 0 : index
    %c0_27 = arith.constant 0 : index
    %27 = vector.load %arg7[%c0_26, %c0_27] : memref<1x128xf32, #tpu.memory_space<vmem>>, vector<1x128xf32>
    %28 = vector.broadcast %27 : vector<1x128xf32> to vector<8x128xf32>
    %29 = arith.addf %26, %28 : vector<8x128xf32>
    %cst_28 = arith.constant 0.000000e+00 : f32
    %30 = vector.broadcast %cst_28 : f32 to vector<8x128xf32>
    %31 = arith.maximumf %29, %30 : vector<8x128xf32>
    %32 = tpu.iota {dimensions = array<i32: 1>} : vector<8x128xi32>
    %c10_i32 = arith.constant 10 : i32
    %33 = vector.broadcast %c10_i32 : i32 to vector<8x128xi32>
    %34 = arith.cmpi slt, %32, %33 : vector<8x128xi32>
    %cst_29 = arith.constant -1.000000e+30 : f32
    %35 = vector.broadcast %cst_29 : f32 to vector<8x128xf32>
    %36 = arith.select %34, %31, %35 : vector<8x128xi1>, vector<8x128xf32>
    %cst_30 = arith.constant dense<0xFF800000> : vector<8xf32>
    %37 = vector.multi_reduction <maximumf>, %36, %cst_30 [1] : vector<8x128xf32> to vector<8xf32>
    %38 = vector.shape_cast %37 : vector<8xf32> to vector<8x1xf32>
    %39 = vector.broadcast %38 : vector<8x1xf32> to vector<8x128xf32>
    %40 = arith.subf %36, %39 : vector<8x128xf32>
    %41 = math.exp %40 : vector<8x128xf32>
    %cst_31 = arith.constant dense<0.000000e+00> : vector<8xf32>
    %42 = vector.multi_reduction <add>, %41, %cst_31 [1] : vector<8x128xf32> to vector<8xf32>
    %43 = vector.shape_cast %42 : vector<8xf32> to vector<8x1xf32>
    %44 = math.log %43 : vector<8x1xf32>
    %45 = vector.broadcast %38 : vector<8x1xf32> to vector<8x128xf32>
    %46 = arith.subf %31, %45 : vector<8x128xf32>
    %47 = vector.broadcast %44 : vector<8x1xf32> to vector<8x128xf32>
    %48 = arith.subf %46, %47 : vector<8x128xf32>
    %cst_32 = arith.constant 0.000000e+00 : f32
    %49 = vector.broadcast %cst_32 : f32 to vector<8x128xf32>
    %50 = arith.select %34, %48, %49 : vector<8x128xi1>, vector<8x128xf32>
    %c0_33 = arith.constant 0 : index
    %c0_34 = arith.constant 0 : index
    %51 = vector.load %arg8[%c0_33, %c0_34] : memref<8x128xf32, #tpu.memory_space<vmem>>, vector<8x128xf32>
    tpu.vector_store %arg8[%c0_33, %c0_34], %50 {strides = array<i32>} : memref<8x128xf32, #tpu.memory_space<vmem>>, vector<8x128xf32>,
    return
  }
  func.func @transform_0(%arg0: i32) -> (i32, i32, i32) {
    %c0_i32 = arith.constant 0 : i32
    %c0_i32_0 = arith.constant 0 : i32
    %c0_i32_1 = arith.constant 0 : i32
    return %arg0, %c0_i32, %c0_i32_0 : i32, i32, i32
  }
  func.func @transform_1(%arg0: i32) -> (i32, i32) {
    %c0_i32 = arith.constant 0 : i32
    %c0_i32_0 = arith.constant 0 : i32
    %c0_i32_1 = arith.constant 0 : i32
    return %c0_i32, %c0_i32_0 : i32, i32
  }
  func.func @transform_2(%arg0: i32) -> (i32, i32) {
    %c0_i32 = arith.constant 0 : i32
    %c0_i32_0 = arith.constant 0 : i32
    %c0_i32_1 = arith.constant 0 : i32
    return %c0_i32, %c0_i32_0 : i32, i32
  }
  func.func @transform_3(%arg0: i32) -> (i32, i32) {
    %c0_i32 = arith.constant 0 : i32
    %c0_i32_0 = arith.constant 0 : i32
    %c0_i32_1 = arith.constant 0 : i32
    return %c0_i32, %c0_i32_0 : i32, i32
  }
  func.func @transform_4(%arg0: i32) -> (i32, i32) {
    %c0_i32 = arith.constant 0 : i32
    %c0_i32_0 = arith.constant 0 : i32
    %c0_i32_1 = arith.constant 0 : i32
    return %c0_i32, %c0_i32_0 : i32, i32
  }
  func.func @transform_5(%arg0: i32) -> (i32, i32, i32) {
    %c0_i32 = arith.constant 0 : i32
    %c0_i32_0 = arith.constant 0 : i32
    %c0_i32_1 = arith.constant 0 : i32
    %c0_i32_2 = arith.constant 0 : i32
    return %c0_i32, %c0_i32_0, %c0_i32_1 : i32, i32, i32
  }
  func.func @transform_6(%arg0: i32) -> (i32, i32) {
    %c0_i32 = arith.constant 0 : i32
    %c0_i32_0 = arith.constant 0 : i32
    %c0_i32_1 = arith.constant 0 : i32
    return %c0_i32, %c0_i32_0 : i32, i32
  }
  func.func @transform_7(%arg0: i32) -> (i32, i32) {
    %c0_i32 = arith.constant 0 : i32
    %c0_i32_0 = arith.constant 0 : i32
    return %arg0, %c0_i32 : i32, i32
  }
}

</mosaic_0001>

<llo_original>
// kernel: forward.1
$region0: #{forward.1}
  #allocation0 [shape = 'u32[]', space=smem, size = 0x4, offset = 0x4, fixed_abs, tag = 'smem constant byte address 0x4 - core index']
  #allocation1 [shape = 'u32[144,128]{1,0:T(1,128)}', space=vmem, size = 0x12000, scoped, tag = 'internal scratch']
  #allocation2 [shape = 'f32[112,128]{1,0:T(8,128)}', space=vmem, size = 0xe000, scoped, tag = 'scratch operand']
  #allocation3 [shape = 'f32[96,128]{1,0:T(8,128)}', space=vmem, size = 0xc000, scoped, tag = 'scratch operand']
  %s0 = inlined_call_operand.vmem [shape: f32[1,128,64], index: 0, kind: input, shape index: {}]
  %s1 = inlined_call_operand.vmem [shape: f32[192,128], index: 1, kind: input, shape index: {}]
  %s2 = inlined_call_operand.vmem [shape: f32[1,128], index: 2, kind: input, shape index: {}]
  %s3 = inlined_call_operand.vmem [shape: f32[384,128], index: 3, kind: input, shape index: {}]
  %s4 = inlined_call_operand.vmem [shape: f32[1,128], index: 4, kind: input, shape index: {}]
  %s5 = inlined_call_operand.vmem [shape: f32[12,128,128], index: 5, kind: input, shape index: {}]
  %s6 = inlined_call_operand.vmem [shape: f32[1,128], index: 6, kind: input, shape index: {}]
  %s7 = inlined_call_operand.vmem [shape: f32[8,128], index: 7, kind: output, shape index: {}]
  %s8 = sld [smem:[#allocation0]]
  $region38: #{forward.1} parent=0
    _
  %s10 = ssub.s32 1, %s8
  %s11 = scalar_select 0, %s10, %s8
  // Predicated region
  $region2: #{forward.1} parent=0 // pred_check
    _
  $region3: #{forward.1} parent=0 // pred_check_branch
    %13 = sbr.rel (0) target = $region5
  $region4: #{forward.1} parent=0 // pred_region
    _
  $region5: #{forward.1} parent=0 // pred_fallthru
    _
  // Predicated region
  $region6: #{forward.1} parent=0 // pred_check
    _
  $region7: #{forward.1} parent=0 // pred_check_branch
    %15 = sbr.rel (0) target = $region9
  $region8: #{forward.1} parent=0 // pred_region
    _
  $region9: #{forward.1} parent=0 // pred_fallthru
    _
  // Predicated region
  $region10: #{forward.1} parent=0 // pred_check
    _
  $region11: #{forward.1} parent=0 // pred_check_branch
    %17 = sbr.rel (0) target = $region13
  $region12: #{forward.1} parent=0 // pred_region
    _
  $region13: #{forward.1} parent=0 // pred_fallthru
    _
  // Predicated region
  $region14: #{forward.1} parent=0 // pred_check
    _
  $region15: #{forward.1} parent=0 // pred_check_branch
    %19 = sbr.rel (0) target = $region17
  $region16: #{forward.1} parent=0 // pred_region
    _
  $region17: #{forward.1} parent=0 // pred_fallthru
    _
  // Predicated region
  $region18: #{forward.1} parent=0 // pred_check
    _
  $region19: #{forward.1} parent=0 // pred_check_branch
    %21 = sbr.rel (0) target = $region21
  $region20: #{forward.1} parent=0 // pred_region
    _
  $region21: #{forward.1} parent=0 // pred_fallthru
    _
  // Predicated region
  $region22: #{forward.1} parent=0 // pred_check
    _
  $region23: #{forward.1} parent=0 // pred_check_branch
    %23 = sbr.rel (0) target = $region25
  $region24: #{forward.1} parent=0 // pred_region
    _
  $region25: #{forward.1} parent=0 // pred_fallthru
    _
  // Predicated region
  $region26: #{forward.1} parent=0 // pred_check
    _
  $region27: #{forward.1} parent=0 // pred_check_branch
    %25 = sbr.rel (0) target = $region29
  $region28: #{forward.1} parent=0 // pred_region
    _
  $region29: #{forward.1} parent=0 // pred_fallthru
    _
  %v26 = vld [vmem:[%s0] sm:$0xff]
  %v27 = vld [vmem:[%s0 + $0x8] sm:$0xff]
  %v28 = vld [vmem:[%s0 + $0x10] sm:$0xff]
  %v29 = vld [vmem:[%s0 + $0x18] sm:$0xff]
  %v30 = vld [vmem:[%s0 + $0x20] sm:$0xff]
  %v31 = vld [vmem:[%s0 + $0x28] sm:$0xff]
  %v32 = vld [vmem:[%s0 + $0x30] sm:$0xff]
  %v33 = vld [vmem:[%s0 + $0x38] sm:$0xff]
  %v34 = vld [vmem:[%s0 + $0x40] sm:$0xff]
  %v35 = vld [vmem:[%s0 + $0x48] sm:$0xff]
  %v36 = vld [vmem:[%s0 + $0x50] sm:$0xff]
  %v37 = vld [vmem:[%s0 + $0x58] sm:$0xff]
  %v38 = vld [vmem:[%s0 + $0x60] sm:$0xff]
  %v39 = vld [vmem:[%s0 + $0x68] sm:$0xff]
  %v40 = vld [vmem:[%s0 + $0x70] sm:$0xff]
  %v41 = vld [vmem:[%s0 + $0x78] sm:$0xff]
  %56 = vrot.lane.b32.xlu0 %v27, 64
  %v57 = vpop.permute.xlu0 %56
  %58 = vrot.lane.b32.xlu0 %v28, 64
  %v59 = vpop.permute.xlu0 %58
  %60 = vrot.lane.b32.xlu0 %v29, 64
  %v61 = vpop.permute.xlu0 %60
  %62 = vrot.lane.b32.xlu0 %v30, 64
  %v63 = vpop.permute.xlu0 %62
  %64 = vrot.lane.b32.xlu0 %v31, 64
  %v65 = vpop.permute.xlu0 %64
  %66 = vrot.lane.b32.xlu0 %v32, 64
  %v67 = vpop.permute.xlu0 %66
  %68 = vrot.lane.b32.xlu0 %v33, 64
  %v69 = vpop.permute.xlu0 %68
  %70 = vrot.lane.b32.xlu0 %v34, 64
  %v71 = vpop.permute.xlu0 %70
  %72 = vrot.lane.b32.xlu0 %v35, 64
  %v73 = vpop.permute.xlu0 %72
  %74 = vrot.lane.b32.xlu0 %v36, 64
  %v75 = vpop.permute.xlu0 %74
  %76 = vrot.lane.b32.xlu0 %v37, 64
  %v77 = vpop.permute.xlu0 %76
  %78 = vrot.lane.b32.xlu0 %v38, 64
  %v79 = vpop.permute.xlu0 %78
  %80 = vrot.lane.b32.xlu0 %v39, 64
  %v81 = vpop.permute.xlu0 %80
  %82 = vrot.lane.b32.xlu0 %v40, 64
  %v83 = vpop.permute.xlu0 %82
  %vm98 = vcmask 523264
  %v99 = vsel %vm98, %v26, %v57
  %v100 = vsel %vm98, %v27, %v59
  %v101 = vsel %vm98, %v28, %v61
  %v102 = vsel %vm98, %v29, %v63
  %v103 = vsel %vm98, %v30, %v65
  %v104 = vsel %vm98, %v31, %v67
  %v105 = vsel %vm98, %v32, %v69
  %v106 = vsel %vm98, %v33, %v71
  %v107 = vsel %vm98, %v34, %v73
  %v108 = vsel %vm98, %v35, %v75
  %v109 = vsel %vm98, %v36, %v77
  %v110 = vsel %vm98, %v37, %v79
  %v111 = vsel %vm98, %v38, %v81
  %v112 = vsel %vm98, %v39, %v83
  %v113 = vld [vmem:[%s1] sm:$0xff]
  %v114 = vld [vmem:[%s1 + $0x8] sm:$0xff]
  %v115 = vld [vmem:[%s1 + $0x10] sm:$0xff]
  %v116 = vld [vmem:[%s1 + $0x18] sm:$0xff]
  %v117 = vld [vmem:[%s1 + $0x20] sm:$0xff]
  %v118 = vld [vmem:[%s1 + $0x28] sm:$0xff]
  %v119 = vld [vmem:[%s1 + $0x30] sm:$0xff]
  %v120 = vld [vmem:[%s1 + $0x38] sm:$0xff]
  %v121 = vld [vmem:[%s1 + $0x40] sm:$0xff]
  %v122 = vld [vmem:[%s1 + $0x48] sm:$0xff]
  %v123 = vld [vmem:[%s1 + $0x50] sm:$0xff]
  %v124 = vld [vmem:[%s1 + $0x58] sm:$0xff]
  %v125 = vld [vmem:[%s1 + $0x60] sm:$0xff]
  %v126 = vld [vmem:[%s1 + $0x68] sm:$0xff]
  %v127 = vld [vmem:[%s1 + $0x70] sm:$0xff]
  %v128 = vld [vmem:[%s1 + $0x78] sm:$0xff]
  %v129 = vld [vmem:[%s1 + $0x80] sm:$0xff]
  %v130 = vld [vmem:[%s1 + $0x88] sm:$0xff]
  %v131 = vld [vmem:[%s1 + $0x90] sm:$0xff]
  %v132 = vld [vmem:[%s1 + $0x98] sm:$0xff]
  %v133 = vld [vmem:[%s1 + $0xa0] sm:$0xff]
  %v134 = vld [vmem:[%s1 + $0xa8] sm:$0xff]
  %v135 = vld [vmem:[%s1 + $0xb0] sm:$0xff]
  %v136 = vld [vmem:[%s1 + $0xb8] sm:$0xff]
  %v137 = vld [vmem:[%s2] sm:$0x1]
  %v139 = vlaneseq
  %v140 = vshrl.u32 %v139, 7
  %v141 = vsub.s32 0, %v140
  %v142 = vrot.slane %v137, %v141
  %v144 = vsel %vm98, %v28, 0
  %v146 = vsel %vm98, %v29, 0
  %v148 = vsel %vm98, %v30, 0
  %v150 = vsel %vm98, %v31, 0
  %v152 = vsel %vm98, %v32, 0
  %v154 = vsel %vm98, %v33, 0
  %v156 = vsel %vm98, %v34, 0
  %v158 = vsel %vm98, %v35, 0
  %v160 = vsel %vm98, %v36, 0
  %v162 = vsel %vm98, %v37, 0
  %v164 = vsel %vm98, %v38, 0
  %v166 = vsel %vm98, %v39, 0
  %v168 = vsel %vm98, %v40, 0
  %v171 = vsel %vm98, %v41, 0
  %173 = vmatprep.subr.mxu0 0.0
  %174 = vmatpush1.msra.mxu0 %v128
  %175 = vmatprep.subr.mxu0 0.0
  %176 = vmatpush1.msra.mxu0 %v127
  %177 = vmatprep.subr.mxu0 0.0
  %178 = vmatpush1.msra.mxu0 %v126
  %179 = vmatprep.subr.mxu0 0.0
  %180 = vmatpush1.msra.mxu0 %v125
  %181 = vmatprep.subr.mxu0 0.0
  %182 = vmatpush1.msra.mxu0 %v124
  %183 = vmatprep.subr.mxu0 0.0
  %184 = vmatpush1.msra.mxu0 %v123
  %185 = vmatprep.subr.mxu0 0.0
  %186 = vmatpush1.msra.mxu0 %v122
  %187 = vmatprep.subr.mxu0 0.0
  %188 = vmatpush1.msra.mxu0 %v121
  %189 = vmatprep.subr.mxu0 0.0
  %190 = vmatpush1.msra.mxu0 %v120
  %191 = vmatprep.subr.mxu0 0.0
  %192 = vmatpush1.msra.mxu0 %v119
  %193 = vmatprep.subr.mxu0 0.0
  %194 = vmatpush1.msra.mxu0 %v118
  %195 = vmatprep.subr.mxu0 0.0
  %196 = vmatpush1.msra.mxu0 %v117
  %197 = vmatprep.subr.mxu0 0.0
  %198 = vmatpush1.msra.mxu0 %v116
  %199 = vmatprep.subr.mxu0 0.0
  %200 = vmatpush1.msra.mxu0 %v115
  %201 = vmatprep.subr.mxu0 0.0
  %202 = vmatpush1.msra.mxu0 %v114
  %203 = vmatprep.subr.mxu0 0.0
  %204 = vmatpush1.msra.mxu0 %v113
  %205 = vmatprep.subr.mxu0 0.0
  %206 = vmatpush2.msra.mxu0 0.0
  %207 = vmatprep.subr.mxu0 0.0
  %208 = vmatpush2.msra.mxu0 0.0
  %209 = vmatprep.subr.mxu0 0.0
  %210 = vmatpush2.msra.mxu0 0.0
  %211 = vmatprep.subr.mxu0 0.0
  %212 = vmatpush2.msra.mxu0 0.0
  %213 = vmatprep.subr.mxu0 0.0
  %214 = vmatpush2.msra.mxu0 0.0
  %215 = vmatprep.subr.mxu0 0.0
  %216 = vmatpush2.msra.mxu0 0.0
  %217 = vmatprep.subr.mxu0 0.0
  %218 = vmatpush2.msra.mxu0 0.0
  %219 = vmatprep.subr.mxu0 0.0
  %220 = vmatpush2.msra.mxu0 0.0
  %221 = vmatprep.subr.mxu0 0.0
  %222 = vmatpush2.msra.mxu0 %v136
  %223 = vmatprep.subr.mxu0 0.0
  %224 = vmatpush2.msra.mxu0 %v135
  %225 = vmatprep.subr.mxu0 0.0
  %226 = vmatpush2.msra.mxu0 %v134
  %227 = vmatprep.subr.mxu0 0.0
  %228 = vmatpush2.msra.mxu0 %v133
  %229 = vmatprep.subr.mxu0 0.0
  %230 = vmatpush2.msra.mxu0 %v132
  %231 = vmatprep.subr.mxu0 0.0
  %232 = vmatpush2.msra.mxu0 %v131
  %233 = vmatprep.subr.mxu0 0.0
  %234 = vmatpush2.msra.mxu0 %v130
  %235 = vmatprep.subr.mxu0 0.0
  %236 = vmatpush2.msra.mxu0 %v129
  %237 = vmatprep.mubr.f32.mxu0 %v144
  %238 = vmatmul.mubr.f32.gmra.mxu0 %v99
  %v239 = vpop.f32.mrf.mxu0
  %v240 = vadd.f32 %v142, %v239
  %v241 = vpop.f32.mrf.mxu0
  %242 = vmatprep.mubr.f32.mxu0 %v146
  %243 = vmatmul.mubr.f32.gmra.mxu0 %v100
  %v244 = vpop.f32.mrf.mxu0
  %v245 = vadd.f32 %v142, %v244
  %v246 = vpop.f32.mrf.mxu0
  %247 = vmatprep.mubr.f32.mxu0 %v148
  %248 = vmatmul.mubr.f32.gmra.mxu0 %v101
  %v249 = vpop.f32.mrf.mxu0
  %v250 = vadd.f32 %v142, %v249
  %v251 = vpop.f32.mrf.mxu0
  %252 = vmatprep.mubr.f32.mxu0 %v150
  %253 = vmatmul.mubr.f32.gmra.mxu0 %v102
  %v254 = vpop.f32.mrf.mxu0
  %v255 = vadd.f32 %v142, %v254
  %v256 = vpop.f32.mrf.mxu0
  %257 = vmatprep.mubr.f32.mxu0 %v152
  %258 = vmatmul.mubr.f32.gmra.mxu0 %v103
  %v259 = vpop.f32.mrf.mxu0
  %v260 = vadd.f32 %v142, %v259
  %v261 = vpop.f32.mrf.mxu0
  %262 = vmatprep.mubr.f32.mxu0 %v154
  %263 = vmatmul.mubr.f32.gmra.mxu0 %v104
  %v264 = vpop.f32.mrf.mxu0
  %v265 = vadd.f32 %v142, %v264
  %v266 = vpop.f32.mrf.mxu0
  %267 = vmatprep.mubr.f32.mxu0 %v156
  %268 = vmatmul.mubr.f32.gmra.mxu0 %v105
  %v269 = vpop.f32.mrf.mxu0
  %v270 = vadd.f32 %v142, %v269
  %v271 = vpop.f32.mrf.mxu0
  %272 = vmatprep.mubr.f32.mxu0 %v158
  %273 = vmatmul.mubr.f32.gmra.mxu0 %v106
  %v274 = vpop.f32.mrf.mxu0
  %v275 = vadd.f32 %v142, %v274
  %v276 = vpop.f32.mrf.mxu0
  %277 = vmatprep.mubr.f32.mxu0 %v160
  %278 = vmatmul.mubr.f32.gmra.mxu0 %v107
  %v279 = vpop.f32.mrf.mxu0
  %v280 = vadd.f32 %v142, %v279
  %v281 = vpop.f32.mrf.mxu0
  %282 = vmatprep.mubr.f32.mxu0 %v162
  %283 = vmatmul.mubr.f32.gmra.mxu0 %v108
  %v284 = vpop.f32.mrf.mxu0
  %v285 = vadd.f32 %v142, %v284
  %v286 = vpop.f32.mrf.mxu0
  %287 = vmatprep.mubr.f32.mxu0 %v164
  %288 = vmatmul.mubr.f32.gmra.mxu0 %v109
  %v289 = vpop.f32.mrf.mxu0
  %v290 = vadd.f32 %v142, %v289
  %v291 = vpop.f32.mrf.mxu0
  %292 = vmatprep.mubr.f32.mxu0 %v166
  %293 = vmatmul.mubr.f32.gmra.mxu0 %v110
  %v294 = vpop.f32.mrf.mxu0
  %v295 = vadd.f32 %v142, %v294
  %v296 = vpop.f32.mrf.mxu0
  %297 = vmatprep.mubr.f32.mxu0 %v168
  %298 = vmatmul.mubr.f32.gmra.mxu0 %v111
  %v299 = vpop.f32.mrf.mxu0
  %v300 = vadd.f32 %v142, %v299
  %v301 = vpop.f32.mrf.mxu0
  %302 = vmatprep.mubr.f32.mxu0 %v171
  %303 = vmatmul.mubr.f32.gmra.mxu0 %v112
  %v304 = vpop.f32.mrf.mxu0
  %v305 = vadd.f32 %v142, %v304
  %v306 = vpop.f32.mrf.mxu0
  %307 = vdwg.mxu0
  %308 = vst [vmem:[#allocation2] sm:$0xff] %v240
  %309 = vst [vmem:[#allocation2 + $0x8] sm:$0xff] %v245
  %310 = vst [vmem:[#allocation2 + $0x10] sm:$0xff] %v250
  %311 = vst [vmem:[#allocation2 + $0x18] sm:$0xff] %v255
  %312 = vst [vmem:[#allocation2 + $0x20] sm:$0xff] %v260
  %313 = vst [vmem:[#allocation2 + $0x28] sm:$0xff] %v265
  %314 = vst [vmem:[#allocation2 + $0x30] sm:$0xff] %v270
  %315 = vst [vmem:[#allocation2 + $0x38] sm:$0xff] %v275
  %316 = vst [vmem:[#allocation2 + $0x40] sm:$0xff] %v280
  %317 = vst [vmem:[#allocation2 + $0x48] sm:$0xff] %v285
  %318 = vst [vmem:[#allocation2 + $0x50] sm:$0xff] %v290
  %319 = vst [vmem:[#allocation2 + $0x58] sm:$0xff] %v295
  %320 = vst [vmem:[#allocation2 + $0x60] sm:$0xff] %v300
  %321 = vst [vmem:[#allocation2 + $0x68] sm:$0xff] %v305
  %v322 = vld [vmem:[#allocation2] sm:$0xff]
  %v323 = vld [vmem:[#allocation2 + $0x8] sm:$0xff]
  %v324 = vld [vmem:[#allocation2 + $0x10] sm:$0xff]
  %v325 = vld [vmem:[#allocation2 + $0x18] sm:$0xff]
  %v326 = vld [vmem:[#allocation2 + $0x20] sm:$0xff]
  %v327 = vld [vmem:[#allocation2 + $0x28] sm:$0xff]
  %v328 = vld [vmem:[#allocation2 + $0x30] sm:$0xff]
  %v329 = vld [vmem:[#allocation2 + $0x38] sm:$0xff]
  %v330 = vld [vmem:[#allocation2 + $0x40] sm:$0xff]
  %v331 = vld [vmem:[#allocation2 + $0x48] sm:$0xff]
  %v332 = vld [vmem:[#allocation2 + $0x50] sm:$0xff]
  %v333 = vld [vmem:[#allocation2 + $0x58] sm:$0xff]
  %v334 = vld [vmem:[#allocation2 + $0x60] sm:$0xff]
  %v335 = vld [vmem:[#allocation2 + $0x10] sm:$0xff]
  %v336 = vld [vmem:[#allocation2 + $0x18] sm:$0xff]
  %v337 = vld [vmem:[#allocation2 + $0x20] sm:$0xff]
  %v338 = vld [vmem:[#allocation2 + $0x28] sm:$0xff]
  %v339 = vld [vmem:[#allocation2 + $0x30] sm:$0xff]
  %v340 = vld [vmem:[#allocation2 + $0x38] sm:$0xff]
  %v341 = vld [vmem:[#allocation2 + $0x40] sm:$0xff]
  %v342 = vld [vmem:[#allocation2 + $0x48] sm:$0xff]
  %v343 = vld [vmem:[#allocation2 + $0x50] sm:$0xff]
  %v344 = vld [vmem:[#allocation2 + $0x58] sm:$0xff]
  %v345 = vld [vmem:[#allocation2 + $0x60] sm:$0xff]
  %v346 = vld [vmem:[#allocation2 + $0x68] sm:$0xff]
  %v347 = vld [vmem:[%s3] sm:$0xff]
  %v348 = vld [vmem:[%s3 + $0x8] sm:$0xff]
  %v349 = vld [vmem:[%s3 + $0x10] sm:$0xff]
  %v350 = vld [vmem:[%s3 + $0x18] sm:$0xff]
  %v351 = vld [vmem:[%s3 + $0x20] sm:$0xff]
  %v352 = vld [vmem:[%s3 + $0x28] sm:$0xff]
  %v353 = vld [vmem:[%s3 + $0x30] sm:$0xff]
  %v354 = vld [vmem:[%s3 + $0x38] sm:$0xff]
  %v355 = vld [vmem:[%s3 + $0x40] sm:$0xff]
  %v356 = vld [vmem:[%s3 + $0x48] sm:$0xff]
  %v357 = vld [vmem:[%s3 + $0x50] sm:$0xff]
  %v358 = vld [vmem:[%s3 + $0x58] sm:$0xff]
  %v359 = vld [vmem:[%s3 + $0x60] sm:$0xff]
  %v360 = vld [vmem:[%s3 + $0x68] sm:$0xff]
  %v361 = vld [vmem:[%s3 + $0x70] sm:$0xff]
  %v362 = vld [vmem:[%s3 + $0x78] sm:$0xff]
  %v363 = vld [vmem:[%s3 + $0x80] sm:$0xff]
  %v364 = vld [vmem:[%s3 + $0x88] sm:$0xff]
  %v365 = vld [vmem:[%s3 + $0x90] sm:$0xff]
  %v366 = vld [vmem:[%s3 + $0x98] sm:$0xff]
  %v367 = vld [vmem:[%s3 + $0xa0] sm:$0xff]
  %v368 = vld [vmem:[%s3 + $0xa8] sm:$0xff]
  %v369 = vld [vmem:[%s3 + $0xb0] sm:$0xff]
  %v370 = vld [vmem:[%s3 + $0xb8] sm:$0xff]
  %v371 = vld [vmem:[%s3 + $0xc0] sm:$0xff]
  %v372 = vld [vmem:[%s3 + $0xc8] sm:$0xff]
  %v373 = vld [vmem:[%s3 + $0xd0] sm:$0xff]
  %v374 = vld [vmem:[%s3 + $0xd8] sm:$0xff]
  %v375 = vld [vmem:[%s3 + $0xe0] sm:$0xff]
  %v376 = vld [vmem:[%s3 + $0xe8] sm:$0xff]
  %v377 = vld [vmem:[%s3 + $0xf0] sm:$0xff]
  %v378 = vld [vmem:[%s3 + $0xf8] sm:$0xff]
  %v379 = vld [vmem:[%s3 + $0x100] sm:$0xff]
  %v380 = vld [vmem:[%s3 + $0x108] sm:$0xff]
  %v381 = vld [vmem:[%s3 + $0x110] sm:$0xff]
  %v382 = vld [vmem:[%s3 + $0x118] sm:$0xff]
  %v383 = vld [vmem:[%s3 + $0x120] sm:$0xff]
  %v384 = vld [vmem:[%s3 + $0x128] sm:$0xff]
  %v385 = vld [vmem:[%s3 + $0x130] sm:$0xff]
  %v386 = vld [vmem:[%s3 + $0x138] sm:$0xff]
  %v387 = vld [vmem:[%s3 + $0x140] sm:$0xff]
  %v388 = vld [vmem:[%s3 + $0x148] sm:$0xff]
  %v389 = vld [vmem:[%s3 + $0x150] sm:$0xff]
  %v390 = vld [vmem:[%s3 + $0x158] sm:$0xff]
  %v391 = vld [vmem:[%s3 + $0x160] sm:$0xff]
  %v392 = vld [vmem:[%s3 + $0x168] sm:$0xff]
  %v393 = vld [vmem:[%s3 + $0x170] sm:$0xff]
  %v394 = vld [vmem:[%s3 + $0x178] sm:$0xff]
  %v395 = vld [vmem:[%s4] sm:$0x1]
  %v397 = vlaneseq
  %v398 = vshrl.u32 %v397, 7
  %v399 = vsub.s32 0, %v398
  %v400 = vrot.slane %v395, %v399
  %402 = vmatprep.subr.mxu0 0.0
  %403 = vmatpush1.msra.mxu0 %v362
  %404 = vmatprep.subr.mxu0 0.0
  %405 = vmatpush1.msra.mxu0 %v361
  %406 = vmatprep.subr.mxu0 0.0
  %407 = vmatpush1.msra.mxu0 %v360
  %408 = vmatprep.subr.mxu0 0.0
  %409 = vmatpush1.msra.mxu0 %v359
  %410 = vmatprep.subr.mxu0 0.0
  %411 = vmatpush1.msra.mxu0 %v358
  %412 = vmatprep.subr.mxu0 0.0
  %413 = vmatpush1.msra.mxu0 %v357
  %414 = vmatprep.subr.mxu0 0.0
  %415 = vmatpush1.msra.mxu0 %v356
  %416 = vmatprep.subr.mxu0 0.0
  %417 = vmatpush1.msra.mxu0 %v355
  %418 = vmatprep.subr.mxu0 0.0
  %419 = vmatpush1.msra.mxu0 %v354
  %420 = vmatprep.subr.mxu0 0.0
  %421 = vmatpush1.msra.mxu0 %v353
  %422 = vmatprep.subr.mxu0 0.0
  %423 = vmatpush1.msra.mxu0 %v352
  %424 = vmatprep.subr.mxu0 0.0
  %425 = vmatpush1.msra.mxu0 %v351
  %426 = vmatprep.subr.mxu0 0.0
  %427 = vmatpush1.msra.mxu0 %v350
  %428 = vmatprep.subr.mxu0 0.0
  %429 = vmatpush1.msra.mxu0 %v349
  %430 = vmatprep.subr.mxu0 0.0
  %431 = vmatpush1.msra.mxu0 %v348
  %432 = vmatprep.subr.mxu0 0.0
  %433 = vmatpush1.msra.mxu0 %v347
  %434 = vmatprep.subr.mxu0 0.0
  %435 = vmatpush2.msra.mxu0 %v378
  %436 = vmatprep.subr.mxu0 0.0
  %437 = vmatpush2.msra.mxu0 %v377
  %438 = vmatprep.subr.mxu0 0.0
  %439 = vmatpush2.msra.mxu0 %v376
  %440 = vmatprep.subr.mxu0 0.0
  %441 = vmatpush2.msra.mxu0 %v375
  %442 = vmatprep.subr.mxu0 0.0
  %443 = vmatpush2.msra.mxu0 %v374
  %444 = vmatprep.subr.mxu0 0.0
  %445 = vmatpush2.msra.mxu0 %v373
  %446 = vmatprep.subr.mxu0 0.0
  %447 = vmatpush2.msra.mxu0 %v372
  %448 = vmatprep.subr.mxu0 0.0
  %449 = vmatpush2.msra.mxu0 %v371
  %450 = vmatprep.subr.mxu0 0.0
  %451 = vmatpush2.msra.mxu0 %v370
  %452 = vmatprep.subr.mxu0 0.0
  %453 = vmatpush2.msra.mxu0 %v369
  %454 = vmatprep.subr.mxu0 0.0
  %455 = vmatpush2.msra.mxu0 %v368
  %456 = vmatprep.subr.mxu0 0.0
  %457 = vmatpush2.msra.mxu0 %v367
  %458 = vmatprep.subr.mxu0 0.0
  %459 = vmatpush2.msra.mxu0 %v366
  %460 = vmatprep.subr.mxu0 0.0
  %461 = vmatpush2.msra.mxu0 %v365
  %462 = vmatprep.subr.mxu0 0.0
  %463 = vmatpush2.msra.mxu0 %v364
  %464 = vmatprep.subr.mxu0 0.0
  %465 = vmatpush2.msra.mxu0 %v363
  %466 = vmatprep.mubr.f32.mxu0 %v323
  %467 = vmatmul.mubr.f32.gmra.mxu0 %v322
  %v468 = vpop.f32.mrf.mxu0
  %v469 = vadd.f32 %v400, %v468
  %v470 = vpop.f32.mrf.mxu0
  %471 = vmatprep.mubr.f32.mxu0 %v324
  %472 = vmatmul.mubr.f32.gmra.mxu0 %v323
  %v473 = vpop.f32.mrf.mxu0
  %v474 = vadd.f32 %v400, %v473
  %v475 = vpop.f32.mrf.mxu0
  %476 = vmatprep.mubr.f32.mxu0 %v325
  %477 = vmatmul.mubr.f32.gmra.mxu0 %v324
  %v478 = vpop.f32.mrf.mxu0
  %v479 = vadd.f32 %v400, %v478
  %v480 = vpop.f32.mrf.mxu0
  %481 = vmatprep.mubr.f32.mxu0 %v326
  %482 = vmatmul.mubr.f32.gmra.mxu0 %v325
  %v483 = vpop.f32.mrf.mxu0
  %v484 = vadd.f32 %v400, %v483
  %v485 = vpop.f32.mrf.mxu0
  %486 = vmatprep.mubr.f32.mxu0 %v327
  %487 = vmatmul.mubr.f32.gmra.mxu0 %v326
  %v488 = vpop.f32.mrf.mxu0
  %v489 = vadd.f32 %v400, %v488
  %v490 = vpop.f32.mrf.mxu0
  %491 = vmatprep.mubr.f32.mxu0 %v328
  %492 = vmatmul.mubr.f32.gmra.mxu0 %v327
  %v493 = vpop.f32.mrf.mxu0
  %v494 = vadd.f32 %v400, %v493
  %v495 = vpop.f32.mrf.mxu0
  %496 = vmatprep.mubr.f32.mxu0 %v329
  %497 = vmatmul.mubr.f32.gmra.mxu0 %v328
  %v498 = vpop.f32.mrf.mxu0
  %v499 = vadd.f32 %v400, %v498
  %v500 = vpop.f32.mrf.mxu0
  %501 = vmatprep.mubr.f32.mxu0 %v330
  %502 = vmatmul.mubr.f32.gmra.mxu0 %v329
  %v503 = vpop.f32.mrf.mxu0
  %v504 = vadd.f32 %v400, %v503
  %v505 = vpop.f32.mrf.mxu0
  %506 = vmatprep.mubr.f32.mxu0 %v331
  %507 = vmatmul.mubr.f32.gmra.mxu0 %v330
  %v508 = vpop.f32.mrf.mxu0
  %v509 = vadd.f32 %v400, %v508
  %v510 = vpop.f32.mrf.mxu0
  %511 = vmatprep.mubr.f32.mxu0 %v332
  %512 = vmatmul.mubr.f32.gmra.mxu0 %v331
  %v513 = vpop.f32.mrf.mxu0
  %v514 = vadd.f32 %v400, %v513
  %v515 = vpop.f32.mrf.mxu0
  %516 = vmatprep.mubr.f32.mxu0 %v333
  %517 = vmatmul.mubr.f32.gmra.mxu0 %v332
  %v518 = vpop.f32.mrf.mxu0
  %v519 = vadd.f32 %v400, %v518
  %v520 = vpop.f32.mrf.mxu0
  %521 = vmatprep.mubr.f32.mxu0 %v334
  %522 = vmatmul.mubr.f32.gmra.mxu0 %v333
  %v523 = vpop.f32.mrf.mxu0
  %v524 = vadd.f32 %v400, %v523
  %v525 = vpop.f32.mrf.mxu0
  %526 = vdwg.mxu0
  %527 = vmatprep.subr.mxu0 0.0
  %528 = vmatpush1.msra.mxu0 %v394
  %529 = vmatprep.subr.mxu0 0.0
  %530 = vmatpush1.msra.mxu0 %v393
  %531 = vmatprep.subr.mxu0 0.0
  %532 = vmatpush1.msra.mxu0 %v392
  %533 = vmatprep.subr.mxu0 0.0
  %534 = vmatpush1.msra.mxu0 %v391
  %535 = vmatprep.subr.mxu0 0.0
  %536 = vmatpush1.msra.mxu0 %v390
  %537 = vmatprep.subr.mxu0 0.0
  %538 = vmatpush1.msra.mxu0 %v389
  %539 = vmatprep.subr.mxu0 0.0
  %540 = vmatpush1.msra.mxu0 %v388
  %541 = vmatprep.subr.mxu0 0.0
  %542 = vmatpush1.msra.mxu0 %v387
  %543 = vmatprep.subr.mxu0 0.0
  %544 = vmatpush1.msra.mxu0 %v386
  %545 = vmatprep.subr.mxu0 0.0
  %546 = vmatpush1.msra.mxu0 %v385
  %547 = vmatprep.subr.mxu0 0.0
  %548 = vmatpush1.msra.mxu0 %v384
  %549 = vmatprep.subr.mxu0 0.0
  %550 = vmatpush1.msra.mxu0 %v383
  %551 = vmatprep.subr.mxu0 0.0
  %552 = vmatpush1.msra.mxu0 %v382
  %553 = vmatprep.subr.mxu0 0.0
  %554 = vmatpush1.msra.mxu0 %v381
  %555 = vmatprep.subr.mxu0 0.0
  %556 = vmatpush1.msra.mxu0 %v380
  %557 = vmatprep.subr.mxu0 0.0
  %558 = vmatpush1.msra.mxu0 %v379
  %559 = vmatprep.subr.mxu0 0.0
  %560 = vmatpush2.msra.mxu0 0.0
  %561 = vmatprep.subr.mxu0 0.0
  %562 = vmatpush2.msra.mxu0 0.0
  %563 = vmatprep.subr.mxu0 0.0
  %564 = vmatpush2.msra.mxu0 0.0
  %565 = vmatprep.subr.mxu0 0.0
  %566 = vmatpush2.msra.mxu0 0.0
  %567 = vmatprep.subr.mxu0 0.0
  %568 = vmatpush2.msra.mxu0 0.0
  %569 = vmatprep.subr.mxu0 0.0
  %570 = vmatpush2.msra.mxu0 0.0
  %571 = vmatprep.subr.mxu0 0.0
  %572 = vmatpush2.msra.mxu0 0.0
  %573 = vmatprep.subr.mxu0 0.0
  %574 = vmatpush2.msra.mxu0 0.0
  %575 = vmatprep.subr.mxu0 0.0
  %576 = vmatpush2.msra.mxu0 0.0
  %577 = vmatprep.subr.mxu0 0.0
  %578 = vmatpush2.msra.mxu0 0.0
  %579 = vmatprep.subr.mxu0 0.0
  %580 = vmatpush2.msra.mxu0 0.0
  %581 = vmatprep.subr.mxu0 0.0
  %582 = vmatpush2.msra.mxu0 0.0
  %583 = vmatprep.subr.mxu0 0.0
  %584 = vmatpush2.msra.mxu0 0.0
  %585 = vmatprep.subr.mxu0 0.0
  %586 = vmatpush2.msra.mxu0 0.0
  %587 = vmatprep.subr.mxu0 0.0
  %588 = vmatpush2.msra.mxu0 0.0
  %589 = vmatprep.subr.mxu0 0.0
  %590 = vmatpush2.msra.mxu0 0.0
  %591 = vmatprep.mubr.f32.mxu0 0.0
  %592 = vmatmul.mubr.f32.gmra.mxu0 %v335
  %v593 = vpop.f32.mrf.mxu0
  %v594 = vadd.f32 %v469, %v593
  %v595 = vpop.f32.mrf.mxu0
  %596 = vmatprep.mubr.f32.mxu0 0.0
  %597 = vmatmul.mubr.f32.gmra.mxu0 %v336
  %v598 = vpop.f32.mrf.mxu0
  %v599 = vadd.f32 %v474, %v598
  %v600 = vpop.f32.mrf.mxu0
  %601 = vmatprep.mubr.f32.mxu0 0.0
  %602 = vmatmul.mubr.f32.gmra.mxu0 %v337
  %v603 = vpop.f32.mrf.mxu0
  %v604 = vadd.f32 %v479, %v603
  %v605 = vpop.f32.mrf.mxu0
  %606 = vmatprep.mubr.f32.mxu0 0.0
  %607 = vmatmul.mubr.f32.gmra.mxu0 %v338
  %v608 = vpop.f32.mrf.mxu0
  %v609 = vadd.f32 %v484, %v608
  %v610 = vpop.f32.mrf.mxu0
  %611 = vmatprep.mubr.f32.mxu0 0.0
  %612 = vmatmul.mubr.f32.gmra.mxu0 %v339
  %v613 = vpop.f32.mrf.mxu0
  %v614 = vadd.f32 %v489, %v613
  %v615 = vpop.f32.mrf.mxu0
  %616 = vmatprep.mubr.f32.mxu0 0.0
  %617 = vmatmul.mubr.f32.gmra.mxu0 %v340
  %v618 = vpop.f32.mrf.mxu0
  %v619 = vadd.f32 %v494, %v618
  %v620 = vpop.f32.mrf.mxu0
  %621 = vmatprep.mubr.f32.mxu0 0.0
  %622 = vmatmul.mubr.f32.gmra.mxu0 %v341
  %v623 = vpop.f32.mrf.mxu0
  %v624 = vadd.f32 %v499, %v623
  %v625 = vpop.f32.mrf.mxu0
  %626 = vmatprep.mubr.f32.mxu0 0.0
  %627 = vmatmul.mubr.f32.gmra.mxu0 %v342
  %v628 = vpop.f32.mrf.mxu0
  %v629 = vadd.f32 %v504, %v628
  %v630 = vpop.f32.mrf.mxu0
  %631 = vmatprep.mubr.f32.mxu0 0.0
  %632 = vmatmul.mubr.f32.gmra.mxu0 %v343
  %v633 = vpop.f32.mrf.mxu0
  %v634 = vadd.f32 %v509, %v633
  %v635 = vpop.f32.mrf.mxu0
  %636 = vmatprep.mubr.f32.mxu0 0.0
  %637 = vmatmul.mubr.f32.gmra.mxu0 %v344
  %v638 = vpop.f32.mrf.mxu0
  %v639 = vadd.f32 %v514, %v638
  %v640 = vpop.f32.mrf.mxu0
  %641 = vmatprep.mubr.f32.mxu0 0.0
  %642 = vmatmul.mubr.f32.gmra.mxu0 %v345
  %v643 = vpop.f32.mrf.mxu0
  %v644 = vadd.f32 %v519, %v643
  %v645 = vpop.f32.mrf.mxu0
  %646 = vmatprep.mubr.f32.mxu0 0.0
  %647 = vmatmul.mubr.f32.gmra.mxu0 %v346
  %v648 = vpop.f32.mrf.mxu0
  %v649 = vadd.f32 %v524, %v648
  %v650 = vpop.f32.mrf.mxu0
  %651 = vdwg.mxu0
  %652 = vst [vmem:[#allocation3] sm:$0xff] %v594
  %653 = vst [vmem:[#allocation3 + $0x8] sm:$0xff] %v599
  %654 = vst [vmem:[#allocation3 + $0x10] sm:$0xff] %v604
  %655 = vst [vmem:[#allocation3 + $0x18] sm:$0xff] %v609
  %656 = vst [vmem:[#allocation3 + $0x20] sm:$0xff] %v614
  %657 = vst [vmem:[#allocation3 + $0x28] sm:$0xff] %v619
  %658 = vst [vmem:[#allocation3 + $0x30] sm:$0xff] %v624
  %659 = vst [vmem:[#allocation3 + $0x38] sm:$0xff] %v629
  %660 = vst [vmem:[#allocation3 + $0x40] sm:$0xff] %v634
  %661 = vst [vmem:[#allocation3 + $0x48] sm:$0xff] %v639
  %662 = vst [vmem:[#allocation3 + $0x50] sm:$0xff] %v644
  %663 = vst [vmem:[#allocation3 + $0x58] sm:$0xff] %v649
  %v664 = vld [vmem:[#allocation3] sm:$0xff]
  %v665 = vld [vmem:[#allocation3 + $0x8] sm:$0xff]
  %v666 = vld [vmem:[#allocation3 + $0x10] sm:$0xff]
  %v667 = vld [vmem:[#allocation3 + $0x18] sm:$0xff]
  %v668 = vld [vmem:[#allocation3 + $0x20] sm:$0xff]
  %v669 = vld [vmem:[#allocation3 + $0x28] sm:$0xff]
  %v670 = vld [vmem:[#allocation3 + $0x30] sm:$0xff]
  %v671 = vld [vmem:[#allocation3 + $0x38] sm:$0xff]
  %v672 = vld [vmem:[#allocation3 + $0x40] sm:$0xff]
  %v673 = vld [vmem:[#allocation3 + $0x48] sm:$0xff]
  %v674 = vld [vmem:[#allocation3 + $0x50] sm:$0xff]
  %v675 = vld [vmem:[#allocation3 + $0x58] sm:$0xff]
  %v676 = vld [vmem:[%s5] sm:$0xff]
  %v677 = vld [vmem:[%s5 + $0x8] sm:$0xff]
  %v678 = vld [vmem:[%s5 + $0x10] sm:$0xff]
  %v679 = vld [vmem:[%s5 + $0x18] sm:$0xff]
  %v680 = vld [vmem:[%s5 + $0x20] sm:$0xff]
  %v681 = vld [vmem:[%s5 + $0x28] sm:$0xff]
  %v682 = vld [vmem:[%s5 + $0x30] sm:$0xff]
  %v683 = vld [vmem:[%s5 + $0x38] sm:$0xff]
  %v684 = vld [vmem:[%s5 + $0x40] sm:$0xff]
  %v685 = vld [vmem:[%s5 + $0x48] sm:$0xff]
  %v686 = vld [vmem:[%s5 + $0x50] sm:$0xff]
  %v687 = vld [vmem:[%s5 + $0x58] sm:$0xff]
  %v688 = vld [vmem:[%s5 + $0x60] sm:$0xff]
  %v689 = vld [vmem:[%s5 + $0x68] sm:$0xff]
  %v690 = vld [vmem:[%s5 + $0x70] sm:$0xff]
  %v691 = vld [vmem:[%s5 + $0x78] sm:$0xff]
  %v692 = vld [vmem:[%s5 + $0x80] sm:$0xff]
  %v693 = vld [vmem:[%s5 + $0x88] sm:$0xff]
  %v694 = vld [vmem:[%s5 + $0x90] sm:$0xff]
  %v695 = vld [vmem:[%s5 + $0x98] sm:$0xff]
  %v696 = vld [vmem:[%s5 + $0xa0] sm:$0xff]
  %v697 = vld [vmem:[%s5 + $0xa8] sm:$0xff]
  %v698 = vld [vmem:[%s5 + $0xb0] sm:$0xff]
  %v699 = vld [vmem:[%s5 + $0xb8] sm:$0xff]
  %v700 = vld [vmem:[%s5 + $0xc0] sm:$0xff]
  %v701 = vld [vmem:[%s5 + $0xc8] sm:$0xff]
  %v702 = vld [vmem:[%s5 + $0xd0] sm:$0xff]
  %v703 = vld [vmem:[%s5 + $0xd8] sm:$0xff]
  %v704 = vld [vmem:[%s5 + $0xe0] sm:$0xff]
  %v705 = vld [vmem:[%s5 + $0xe8] sm:$0xff]
  %v706 = vld [vmem:[%s5 + $0xf0] sm:$0xff]
  %v707 = vld [vmem:[%s5 + $0xf8] sm:$0xff]
  %v708 = vld [vmem:[%s5 + $0x100] sm:$0xff]
  %v709 = vld [vmem:[%s5 + $0x108] sm:$0xff]
  %v710 = vld [vmem:[%s5 + $0x110] sm:$0xff]
  %v711 = vld [vmem:[%s5 + $0x118] sm:$0xff]
  %v712 = vld [vmem:[%s5 + $0x120] sm:$0xff]
  %v713 = vld [vmem:[%s5 + $0x128] sm:$0xff]
  %v714 = vld [vmem:[%s5 + $0x130] sm:$0xff]
  %v715 = vld [vmem:[%s5 + $0x138] sm:$0xff]
  %v716 = vld [vmem:[%s5 + $0x140] sm:$0xff]
  %v717 = vld [vmem:[%s5 + $0x148] sm:$0xff]
  %v718 = vld [vmem:[%s5 + $0x150] sm:$0xff]
  %v719 = vld [vmem:[%s5 + $0x158] sm:$0xff]
  %v720 = vld [vmem:[%s5 + $0x160] sm:$0xff]
  %v721 = vld [vmem:[%s5 + $0x168] sm:$0xff]
  %v722 = vld [vmem:[%s5 + $0x170] sm:$0xff]
  %v723 = vld [vmem:[%s5 + $0x178] sm:$0xff]
  %v724 = vld [vmem:[%s5 + $0x180] sm:$0xff]
  %v725 = vld [vmem:[%s5 + $0x188] sm:$0xff]
  %v726 = vld [vmem:[%s5 + $0x190] sm:$0xff]
  %v727 = vld [vmem:[%s5 + $0x198] sm:$0xff]
  %v728 = vld [vmem:[%s5 + $0x1a0] sm:$0xff]
  %v729 = vld [vmem:[%s5 + $0x1a8] sm:$0xff]
  %v730 = vld [vmem:[%s5 + $0x1b0] sm:$0xff]
  %v731 = vld [vmem:[%s5 + $0x1b8] sm:$0xff]
  %v732 = vld [vmem:[%s5 + $0x1c0] sm:$0xff]
  %v733 = vld [vmem:[%s5 + $0x1c8] sm:$0xff]
  %v734 = vld [vmem:[%s5 + $0x1d0] sm:$0xff]
  %v735 = vld [vmem:[%s5 + $0x1d8] sm:$0xff]
  %v736 = vld [vmem:[%s5 + $0x1e0] sm:$0xff]
  %v737 = vld [vmem:[%s5 + $0x1e8] sm:$0xff]
  %v738 = vld [vmem:[%s5 + $0x1f0] sm:$0xff]
  %v739 = vld [vmem:[%s5 + $0x1f8] sm:$0xff]
  %v740 = vld [vmem:[%s5 + $0x200] sm:$0xff]
  %v741 = vld [vmem:[%s5 + $0x208] sm:$0xff]
  %v742 = vld [vmem:[%s5 + $0x210] sm:$0xff]
  %v743 = vld [vmem:[%s5 + $0x218] sm:$0xff]
  %v744 = vld [vmem:[%s5 + $0x220] sm:$0xff]
  %v745 = vld [vmem:[%s5 + $0x228] sm:$0xff]
  %v746 = vld [vmem:[%s5 + $0x230] sm:$0xff]
  %v747 = vld [vmem:[%s5 + $0x238] sm:$0xff]
  %v748 = vld [vmem:[%s5 + $0x240] sm:$0xff]
  %v749 = vld [vmem:[%s5 + $0x248] sm:$0xff]
  %v750 = vld [vmem:[%s5 + $0x250] sm:$0xff]
  %v751 = vld [vmem:[%s5 + $0x258] sm:$0xff]
  %v752 = vld [vmem:[%s5 + $0x260] sm:$0xff]
  %v753 = vld [vmem:[%s5 + $0x268] sm:$0xff]
  %v754 = vld [vmem:[%s5 + $0x270] sm:$0xff]
  %v755 = vld [vmem:[%s5 + $0x278] sm:$0xff]
  %v756 = vld [vmem:[%s5 + $0x280] sm:$0xff]
  %v757 = vld [vmem:[%s5 + $0x288] sm:$0xff]
  %v758 = vld [vmem:[%s5 + $0x290] sm:$0xff]
  %v759 = vld [vmem:[%s5 + $0x298] sm:$0xff]
  %v760 = vld [vmem:[%s5 + $0x2a0] sm:$0xff]
  %v761 = vld [vmem:[%s5 + $0x2a8] sm:$0xff]
  %v762 = vld [vmem:[%s5 + $0x2b0] sm:$0xff]
  %v763 = vld [vmem:[%s5 + $0x2b8] sm:$0xff]
  %v764 = vld [vmem:[%s5 + $0x2c0] sm:$0xff]
  %v765 = vld [vmem:[%s5 + $0x2c8] sm:$0xff]
  %v766 = vld [vmem:[%s5 + $0x2d0] sm:$0xff]
  %v767 = vld [vmem:[%s5 + $0x2d8] sm:$0xff]
  %v768 = vld [vmem:[%s5 + $0x2e0] sm:$0xff]
  %v769 = vld [vmem:[%s5 + $0x2e8] sm:$0xff]
  %v770 = vld [vmem:[%s5 + $0x2f0] sm:$0xff]
  %v771 = vld [vmem:[%s5 + $0x2f8] sm:$0xff]
  %v772 = vld [vmem:[%s5 + $0x300] sm:$0xff]
  %v773 = vld [vmem:[%s5 + $0x308] sm:$0xff]
  %v774 = vld [vmem:[%s5 + $0x310] sm:$0xff]
  %v775 = vld [vmem:[%s5 + $0x318] sm:$0xff]
  %v776 = vld [vmem:[%s5 + $0x320] sm:$0xff]
  %v777 = vld [vmem:[%s5 + $0x328] sm:$0xff]
  %v778 = vld [vmem:[%s5 + $0x330] sm:$0xff]
  %v779 = vld [vmem:[%s5 + $0x338] sm:$0xff]
  %v780 = vld [vmem:[%s5 + $0x340] sm:$0xff]
  %v781 = vld [vmem:[%s5 + $0x348] sm:$0xff]
  %v782 = vld [vmem:[%s5 + $0x350] sm:$0xff]
  %v783 = vld [vmem:[%s5 + $0x358] sm:$0xff]
  %v784 = vld [vmem:[%s5 + $0x360] sm:$0xff]
  %v785 = vld [vmem:[%s5 + $0x368] sm:$0xff]
  %v786 = vld [vmem:[%s5 + $0x370] sm:$0xff]
  %v787 = vld [vmem:[%s5 + $0x378] sm:$0xff]
  %v788 = vld [vmem:[%s5 + $0x380] sm:$0xff]
  %v789 = vld [vmem:[%s5 + $0x388] sm:$0xff]
  %v790 = vld [vmem:[%s5 + $0x390] sm:$0xff]
  %v791 = vld [vmem:[%s5 + $0x398] sm:$0xff]
  %v792 = vld [vmem:[%s5 + $0x3a0] sm:$0xff]
  %v793 = vld [vmem:[%s5 + $0x3a8] sm:$0xff]
  %v794 = vld [vmem:[%s5 + $0x3b0] sm:$0xff]
  %v795 = vld [vmem:[%s5 + $0x3b8] sm:$0xff]
  %v796 = vld [vmem:[%s5 + $0x3c0] sm:$0xff]
  %v797 = vld [vmem:[%s5 + $0x3c8] sm:$0xff]
  %v798 = vld [vmem:[%s5 + $0x3d0] sm:$0xff]
  %v799 = vld [vmem:[%s5 + $0x3d8] sm:$0xff]
  %v800 = vld [vmem:[%s5 + $0x3e0] sm:$0xff]
  %v801 = vld [vmem:[%s5 + $0x3e8] sm:$0xff]
  %v802 = vld [vmem:[%s5 + $0x3f0] sm:$0xff]
  %v803 = vld [vmem:[%s5 + $0x3f8] sm:$0xff]
  %v804 = vld [vmem:[%s5 + $0x400] sm:$0xff]
  %v805 = vld [vmem:[%s5 + $0x408] sm:$0xff]
  %v806 = vld [vmem:[%s5 + $0x410] sm:$0xff]
  %v807 = vld [vmem:[%s5 + $0x418] sm:$0xff]
  %v808 = vld [vmem:[%s5 + $0x420] sm:$0xff]
  %v809 = vld [vmem:[%s5 + $0x428] sm:$0xff]
  %v810 = vld [vmem:[%s5 + $0x430] sm:$0xff]
  %v811 = vld [vmem:[%s5 + $0x438] sm:$0xff]
  %v812 = vld [vmem:[%s5 + $0x440] sm:$0xff]
  %v813 = vld [vmem:[%s5 + $0x448] sm:$0xff]
  %v814 = vld [vmem:[%s5 + $0x450] sm:$0xff]
  %v815 = vld [vmem:[%s5 + $0x458] sm:$0xff]
  %v816 = vld [vmem:[%s5 + $0x460] sm:$0xff]
  %v817 = vld [vmem:[%s5 + $0x468] sm:$0xff]
  %v818 = vld [vmem:[%s5 + $0x470] sm:$0xff]
  %v819 = vld [vmem:[%s5 + $0x478] sm:$0xff]
  %v820 = vld [vmem:[%s5 + $0x480] sm:$0xff]
  %v821 = vld [vmem:[%s5 + $0x488] sm:$0xff]
  %v822 = vld [vmem:[%s5 + $0x490] sm:$0xff]
  %v823 = vld [vmem:[%s5 + $0x498] sm:$0xff]
  %v824 = vld [vmem:[%s5 + $0x4a0] sm:$0xff]
  %v825 = vld [vmem:[%s5 + $0x4a8] sm:$0xff]
  %v826 = vld [vmem:[%s5 + $0x4b0] sm:$0xff]
  %v827 = vld [vmem:[%s5 + $0x4b8] sm:$0xff]
  %v828 = vld [vmem:[%s5 + $0x4c0] sm:$0xff]
  %v829 = vld [vmem:[%s5 + $0x4c8] sm:$0xff]
  %v830 = vld [vmem:[%s5 + $0x4d0] sm:$0xff]
  %v831 = vld [vmem:[%s5 + $0x4d8] sm:$0xff]
  %v832 = vld [vmem:[%s5 + $0x4e0] sm:$0xff]
  %v833 = vld [vmem:[%s5 + $0x4e8] sm:$0xff]
  %v834 = vld [vmem:[%s5 + $0x4f0] sm:$0xff]
  %v835 = vld [vmem:[%s5 + $0x4f8] sm:$0xff]
  %v836 = vld [vmem:[%s5 + $0x500] sm:$0xff]
  %v837 = vld [vmem:[%s5 + $0x508] sm:$0xff]
  %v838 = vld [vmem:[%s5 + $0x510] sm:$0xff]
  %v839 = vld [vmem:[%s5 + $0x518] sm:$0xff]
  %v840 = vld [vmem:[%s5 + $0x520] sm:$0xff]
  %v841 = vld [vmem:[%s5 + $0x528] sm:$0xff]
  %v842 = vld [vmem:[%s5 + $0x530] sm:$0xff]
  %v843 = vld [vmem:[%s5 + $0x538] sm:$0xff]
  %v844 = vld [vmem:[%s5 + $0x540] sm:$0xff]
  %v845 = vld [vmem:[%s5 + $0x548] sm:$0xff]
  %v846 = vld [vmem:[%s5 + $0x550] sm:$0xff]
  %v847 = vld [vmem:[%s5 + $0x558] sm:$0xff]
  %v848 = vld [vmem:[%s5 + $0x560] sm:$0xff]
  %v849 = vld [vmem:[%s5 + $0x568] sm:$0xff]
  %v850 = vld [vmem:[%s5 + $0x570] sm:$0xff]
  %v851 = vld [vmem:[%s5 + $0x578] sm:$0xff]
  %v852 = vld [vmem:[%s5 + $0x580] sm:$0xff]
  %v853 = vld [vmem:[%s5 + $0x588] sm:$0xff]
  %v854 = vld [vmem:[%s5 + $0x590] sm:$0xff]
  %v855 = vld [vmem:[%s5 + $0x598] sm:$0xff]
  %v856 = vld [vmem:[%s5 + $0x5a0] sm:$0xff]
  %v857 = vld [vmem:[%s5 + $0x5a8] sm:$0xff]
  %v858 = vld [vmem:[%s5 + $0x5b0] sm:$0xff]
  %v859 = vld [vmem:[%s5 + $0x5b8] sm:$0xff]
  %v860 = vld [vmem:[%s5 + $0x5c0] sm:$0xff]
  %v861 = vld [vmem:[%s5 + $0x5c8] sm:$0xff]
  %v862 = vld [vmem:[%s5 + $0x5d0] sm:$0xff]
  %v863 = vld [vmem:[%s5 + $0x5d8] sm:$0xff]
  %v864 = vld [vmem:[%s5 + $0x5e0] sm:$0xff]
  %v865 = vld [vmem:[%s5 + $0x5e8] sm:$0xff]
  %v866 = vld [vmem:[%s5 + $0x5f0] sm:$0xff]
  %v867 = vld [vmem:[%s5 + $0x5f8] sm:$0xff]
  %868 = vmatprep.subr.mxu0 0.0
  %869 = vmatpush1.msra.mxu0 %v691
  %870 = vmatprep.subr.mxu0 0.0
  %871 = vmatpush1.msra.mxu0 %v690
  %872 = vmatprep.subr.mxu0 0.0
  %873 = vmatpush1.msra.mxu0 %v689
  %874 = vmatprep.subr.mxu0 0.0
  %875 = vmatpush1.msra.mxu0 %v688
  %876 = vmatprep.subr.mxu0 0.0
  %877 = vmatpush1.msra.mxu0 %v687
  %878 = vmatprep.subr.mxu0 0.0
  %879 = vmatpush1.msra.mxu0 %v686
  %880 = vmatprep.subr.mxu0 0.0
  %881 = vmatpush1.msra.mxu0 %v685
  %882 = vmatprep.subr.mxu0 0.0
  %883 = vmatpush1.msra.mxu0 %v684
  %884 = vmatprep.subr.mxu0 0.0
  %885 = vmatpush1.msra.mxu0 %v683
  %886 = vmatprep.subr.mxu0 0.0
  %887 = vmatpush1.msra.mxu0 %v682
  %888 = vmatprep.subr.mxu0 0.0
  %889 = vmatpush1.msra.mxu0 %v681
  %890 = vmatprep.subr.mxu0 0.0
  %891 = vmatpush1.msra.mxu0 %v680
  %892 = vmatprep.subr.mxu0 0.0
  %893 = vmatpush1.msra.mxu0 %v679
  %894 = vmatprep.subr.mxu0 0.0
  %895 = vmatpush1.msra.mxu0 %v678
  %896 = vmatprep.subr.mxu0 0.0
  %897 = vmatpush1.msra.mxu0 %v677
  %898 = vmatprep.subr.mxu0 0.0
  %899 = vmatpush1.msra.mxu0 %v676
  %900 = vmatprep.subr.mxu0 0.0
  %901 = vmatpush2.msra.mxu0 0.0
  %902 = vmatprep.subr.mxu0 0.0
  %903 = vmatpush2.msra.mxu0 0.0
  %904 = vmatprep.subr.mxu0 0.0
  %905 = vmatpush2.msra.mxu0 0.0
  %906 = vmatprep.subr.mxu0 0.0
  %907 = vmatpush2.msra.mxu0 0.0
  %908 = vmatprep.subr.mxu0 0.0
  %909 = vmatpush2.msra.mxu0 0.0
  %910 = vmatprep.subr.mxu0 0.0
  %911 = vmatpush2.msra.mxu0 0.0
  %912 = vmatprep.subr.mxu0 0.0
  %913 = vmatpush2.msra.mxu0 0.0
  %914 = vmatprep.subr.mxu0 0.0
  %915 = vmatpush2.msra.mxu0 0.0
  %916 = vmatprep.subr.mxu0 0.0
  %917 = vmatpush2.msra.mxu0 0.0
  %918 = vmatprep.subr.mxu0 0.0
  %919 = vmatpush2.msra.mxu0 0.0
  %920 = vmatprep.subr.mxu0 0.0
  %921 = vmatpush2.msra.mxu0 0.0
  %922 = vmatprep.subr.mxu0 0.0
  %923 = vmatpush2.msra.mxu0 0.0
  %924 = vmatprep.subr.mxu0 0.0
  %925 = vmatpush2.msra.mxu0 0.0
  %926 = vmatprep.subr.mxu0 0.0
  %927 = vmatpush2.msra.mxu0 0.0
  %928 = vmatprep.subr.mxu0 0.0
  %929 = vmatpush2.msra.mxu0 0.0
  %930 = vmatprep.subr.mxu0 0.0
  %931 = vmatpush2.msra.mxu0 0.0
  %932 = vmatprep.mubr.f32.mxu0 0.0
  %933 = vmatmul.mubr.f32.gmra.mxu0 %v664
  %v934 = vpop.f32.mrf.mxu0
  %v935 = vadd.f32 0.0, %v934
  %v936 = vpop.f32.mrf.mxu0
  %937 = vdwg.mxu0
  %938 = vmatprep.subr.mxu0 0.0
  %939 = vmatpush1.msra.mxu0 %v707
  %940 = vmatprep.subr.mxu0 0.0
  %941 = vmatpush1.msra.mxu0 %v706
  %942 = vmatprep.subr.mxu0 0.0
  %943 = vmatpush1.msra.mxu0 %v705
  %944 = vmatprep.subr.mxu0 0.0
  %945 = vmatpush1.msra.mxu0 %v704
  %946 = vmatprep.subr.mxu0 0.0
  %947 = vmatpush1.msra.mxu0 %v703
  %948 = vmatprep.subr.mxu0 0.0
  %949 = vmatpush1.msra.mxu0 %v702
  %950 = vmatprep.subr.mxu0 0.0
  %951 = vmatpush1.msra.mxu0 %v701
  %952 = vmatprep.subr.mxu0 0.0
  %953 = vmatpush1.msra.mxu0 %v700
  %954 = vmatprep.subr.mxu0 0.0
  %955 = vmatpush1.msra.mxu0 %v699
  %956 = vmatprep.subr.mxu0 0.0
  %957 = vmatpush1.msra.mxu0 %v698
  %958 = vmatprep.subr.mxu0 0.0
  %959 = vmatpush1.msra.mxu0 %v697
  %960 = vmatprep.subr.mxu0 0.0
  %961 = vmatpush1.msra.mxu0 %v696
  %962 = vmatprep.subr.mxu0 0.0
  %963 = vmatpush1.msra.mxu0 %v695
  %964 = vmatprep.subr.mxu0 0.0
  %965 = vmatpush1.msra.mxu0 %v694
  %966 = vmatprep.subr.mxu0 0.0
  %967 = vmatpush1.msra.mxu0 %v693
  %968 = vmatprep.subr.mxu0 0.0
  %969 = vmatpush1.msra.mxu0 %v692
  %970 = vmatprep.subr.mxu0 0.0
  %971 = vmatpush2.msra.mxu0 0.0
  %972 = vmatprep.subr.mxu0 0.0
  %973 = vmatpush2.msra.mxu0 0.0
  %974 = vmatprep.subr.mxu0 0.0
  %975 = vmatpush2.msra.mxu0 0.0
  %976 = vmatprep.subr.mxu0 0.0
  %977 = vmatpush2.msra.mxu0 0.0
  %978 = vmatprep.subr.mxu0 0.0
  %979 = vmatpush2.msra.mxu0 0.0
  %980 = vmatprep.subr.mxu0 0.0
  %981 = vmatpush2.msra.mxu0 0.0
  %982 = vmatprep.subr.mxu0 0.0
  %983 = vmatpush2.msra.mxu0 0.0
  %984 = vmatprep.subr.mxu0 0.0
  %985 = vmatpush2.msra.mxu0 0.0
  %986 = vmatprep.subr.mxu0 0.0
  %987 = vmatpush2.msra.mxu0 0.0
  %988 = vmatprep.subr.mxu0 0.0
  %989 = vmatpush2.msra.mxu0 0.0
  %990 = vmatprep.subr.mxu0 0.0
  %991 = vmatpush2.msra.mxu0 0.0
  %992 = vmatprep.subr.mxu0 0.0
  %993 = vmatpush2.msra.mxu0 0.0
  %994 = vmatprep.subr.mxu0 0.0
  %995 = vmatpush2.msra.mxu0 0.0
  %996 = vmatprep.subr.mxu0 0.0
  %997 = vmatpush2.msra.mxu0 0.0
  %998 = vmatprep.subr.mxu0 0.0
  %999 = vmatpush2.msra.mxu0 0.0
  %1000 = vmatprep.subr.mxu0 0.0
  %1001 = vmatpush2.msra.mxu0 0.0
  %1002 = vmatprep.mubr.f32.mxu0 0.0
  %1003 = vmatmul.mubr.f32.gmra.mxu0 %v665
  %v1004 = vpop.f32.mrf.mxu0
  %v1005 = vadd.f32 0.0, %v1004
  %v1006 = vpop.f32.mrf.mxu0
  %1007 = vdwg.mxu0
  %1008 = vmatprep.subr.mxu0 0.0
  %1009 = vmatpush1.msra.mxu0 %v723
  %1010 = vmatprep.subr.mxu0 0.0
  %1011 = vmatpush1.msra.mxu0 %v722
  %1012 = vmatprep.subr.mxu0 0.0
  %1013 = vmatpush1.msra.mxu0 %v721
  %1014 = vmatprep.subr.mxu0 0.0
  %1015 = vmatpush1.msra.mxu0 %v720
  %1016 = vmatprep.subr.mxu0 0.0
  %1017 = vmatpush1.msra.mxu0 %v719
  %1018 = vmatprep.subr.mxu0 0.0
  %1019 = vmatpush1.msra.mxu0 %v718
  %1020 = vmatprep.subr.mxu0 0.0
  %1021 = vmatpush1.msra.mxu0 %v717
  %1022 = vmatprep.subr.mxu0 0.0
  %1023 = vmatpush1.msra.mxu0 %v716
  %1024 = vmatprep.subr.mxu0 0.0
  %1025 = vmatpush1.msra.mxu0 %v715
  %1026 = vmatprep.subr.mxu0 0.0
  %1027 = vmatpush1.msra.mxu0 %v714
  %1028 = vmatprep.subr.mxu0 0.0
  %1029 = vmatpush1.msra.mxu0 %v713
  %1030 = vmatprep.subr.mxu0 0.0
  %1031 = vmatpush1.msra.mxu0 %v712
  %1032 = vmatprep.subr.mxu0 0.0
  %1033 = vmatpush1.msra.mxu0 %v711
  %1034 = vmatprep.subr.mxu0 0.0
  %1035 = vmatpush1.msra.mxu0 %v710
  %1036 = vmatprep.subr.mxu0 0.0
  %1037 = vmatpush1.msra.mxu0 %v709
  %1038 = vmatprep.subr.mxu0 0.0
  %1039 = vmatpush1.msra.mxu0 %v708
  %1040 = vmatprep.subr.mxu0 0.0
  %1041 = vmatpush2.msra.mxu0 0.0
  %1042 = vmatprep.subr.mxu0 0.0
  %1043 = vmatpush2.msra.mxu0 0.0
  %1044 = vmatprep.subr.mxu0 0.0
  %1045 = vmatpush2.msra.mxu0 0.0
  %1046 = vmatprep.subr.mxu0 0.0
  %1047 = vmatpush2.msra.mxu0 0.0
  %1048 = vmatprep.subr.mxu0 0.0
  %1049 = vmatpush2.msra.mxu0 0.0
  %1050 = vmatprep.subr.mxu0 0.0
  %1051 = vmatpush2.msra.mxu0 0.0
  %1052 = vmatprep.subr.mxu0 0.0
  %1053 = vmatpush2.msra.mxu0 0.0
  %1054 = vmatprep.subr.mxu0 0.0
  %1055 = vmatpush2.msra.mxu0 0.0
  %1056 = vmatprep.subr.mxu0 0.0
  %1057 = vmatpush2.msra.mxu0 0.0
  %1058 = vmatprep.subr.mxu0 0.0
  %1059 = vmatpush2.msra.mxu0 0.0
  %1060 = vmatprep.subr.mxu0 0.0
  %1061 = vmatpush2.msra.mxu0 0.0
  %1062 = vmatprep.subr.mxu0 0.0
  %1063 = vmatpush2.msra.mxu0 0.0
  %1064 = vmatprep.subr.mxu0 0.0
  %1065 = vmatpush2.msra.mxu0 0.0
  %1066 = vmatprep.subr.mxu0 0.0
  %1067 = vmatpush2.msra.mxu0 0.0
  %1068 = vmatprep.subr.mxu0 0.0
  %1069 = vmatpush2.msra.mxu0 0.0
  %1070 = vmatprep.subr.mxu0 0.0
  %1071 = vmatpush2.msra.mxu0 0.0
  %1072 = vmatprep.mubr.f32.mxu0 0.0
  %1073 = vmatmul.mubr.f32.gmra.mxu0 %v666
  %v1074 = vpop.f32.mrf.mxu0
  %v1075 = vadd.f32 0.0, %v1074
  %v1076 = vpop.f32.mrf.mxu0
  %1077 = vdwg.mxu0
  %1078 = vmatprep.subr.mxu0 0.0
  %1079 = vmatpush1.msra.mxu0 %v739
  %1080 = vmatprep.subr.mxu0 0.0
  %1081 = vmatpush1.msra.mxu0 %v738
  %1082 = vmatprep.subr.mxu0 0.0
  %1083 = vmatpush1.msra.mxu0 %v737
  %1084 = vmatprep.subr.mxu0 0.0
  %1085 = vmatpush1.msra.mxu0 %v736
  %1086 = vmatprep.subr.mxu0 0.0
  %1087 = vmatpush1.msra.mxu0 %v735
  %1088 = vmatprep.subr.mxu0 0.0
  %1089 = vmatpush1.msra.mxu0 %v734
  %1090 = vmatprep.subr.mxu0 0.0
  %1091 = vmatpush1.msra.mxu0 %v733
  %1092 = vmatprep.subr.mxu0 0.0
  %1093 = vmatpush1.msra.mxu0 %v732
  %1094 = vmatprep.subr.mxu0 0.0
  %1095 = vmatpush1.msra.mxu0 %v731
  %1096 = vmatprep.subr.mxu0 0.0
  %1097 = vmatpush1.msra.mxu0 %v730
  %1098 = vmatprep.subr.mxu0 0.0
  %1099 = vmatpush1.msra.mxu0 %v729
  %1100 = vmatprep.subr.mxu0 0.0
  %1101 = vmatpush1.msra.mxu0 %v728
  %1102 = vmatprep.subr.mxu0 0.0
  %1103 = vmatpush1.msra.mxu0 %v727
  %1104 = vmatprep.subr.mxu0 0.0
  %1105 = vmatpush1.msra.mxu0 %v726
  %1106 = vmatprep.subr.mxu0 0.0
  %1107 = vmatpush1.msra.mxu0 %v725
  %1108 = vmatprep.subr.mxu0 0.0
  %1109 = vmatpush1.msra.mxu0 %v724
  %1110 = vmatprep.subr.mxu0 0.0
  %1111 = vmatpush2.msra.mxu0 0.0
  %1112 = vmatprep.subr.mxu0 0.0
  %1113 = vmatpush2.msra.mxu0 0.0
  %1114 = vmatprep.subr.mxu0 0.0
  %1115 = vmatpush2.msra.mxu0 0.0
  %1116 = vmatprep.subr.mxu0 0.0
  %1117 = vmatpush2.msra.mxu0 0.0
  %1118 = vmatprep.subr.mxu0 0.0
  %1119 = vmatpush2.msra.mxu0 0.0
  %1120 = vmatprep.subr.mxu0 0.0
  %1121 = vmatpush2.msra.mxu0 0.0
  %1122 = vmatprep.subr.mxu0 0.0
  %1123 = vmatpush2.msra.mxu0 0.0
  %1124 = vmatprep.subr.mxu0 0.0
  %1125 = vmatpush2.msra.mxu0 0.0
  %1126 = vmatprep.subr.mxu0 0.0
  %1127 = vmatpush2.msra.mxu0 0.0
  %1128 = vmatprep.subr.mxu0 0.0
  %1129 = vmatpush2.msra.mxu0 0.0
  %1130 = vmatprep.subr.mxu0 0.0
  %1131 = vmatpush2.msra.mxu0 0.0
  %1132 = vmatprep.subr.mxu0 0.0
  %1133 = vmatpush2.msra.mxu0 0.0
  %1134 = vmatprep.subr.mxu0 0.0
  %1135 = vmatpush2.msra.mxu0 0.0
  %1136 = vmatprep.subr.mxu0 0.0
  %1137 = vmatpush2.msra.mxu0 0.0
  %1138 = vmatprep.subr.mxu0 0.0
  %1139 = vmatpush2.msra.mxu0 0.0
  %1140 = vmatprep.subr.mxu0 0.0
  %1141 = vmatpush2.msra.mxu0 0.0
  %1142 = vmatprep.mubr.f32.mxu0 0.0
  %1143 = vmatmul.mubr.f32.gmra.mxu0 %v667
  %v1144 = vpop.f32.mrf.mxu0
  %v1145 = vadd.f32 0.0, %v1144
  %v1146 = vpop.f32.mrf.mxu0
  %1147 = vdwg.mxu0
  %1148 = vmatprep.subr.mxu0 0.0
  %1149 = vmatpush1.msra.mxu0 %v755
  %1150 = vmatprep.subr.mxu0 0.0
  %1151 = vmatpush1.msra.mxu0 %v754
  %1152 = vmatprep.subr.mxu0 0.0
  %1153 = vmatpush1.msra.mxu0 %v753
  %1154 = vmatprep.subr.mxu0 0.0
  %1155 = vmatpush1.msra.mxu0 %v752
  %1156 = vmatprep.subr.mxu0 0.0
  %1157 = vmatpush1.msra.mxu0 %v751
  %1158 = vmatprep.subr.mxu0 0.0
  %1159 = vmatpush1.msra.mxu0 %v750
  %1160 = vmatprep.subr.mxu0 0.0
  %1161 = vmatpush1.msra.mxu0 %v749
  %1162 = vmatprep.subr.mxu0 0.0
  %1163 = vmatpush1.msra.mxu0 %v748
  %1164 = vmatprep.subr.mxu0 0.0
  %1165 = vmatpush1.msra.mxu0 %v747
  %1166 = vmatprep.subr.mxu0 0.0
  %1167 = vmatpush1.msra.mxu0 %v746
  %1168 = vmatprep.subr.mxu0 0.0
  %1169 = vmatpush1.msra.mxu0 %v745
  %1170 = vmatprep.subr.mxu0 0.0
  %1171 = vmatpush1.msra.mxu0 %v744
  %1172 = vmatprep.subr.mxu0 0.0
  %1173 = vmatpush1.msra.mxu0 %v743
  %1174 = vmatprep.subr.mxu0 0.0
  %1175 = vmatpush1.msra.mxu0 %v742
  %1176 = vmatprep.subr.mxu0 0.0
  %1177 = vmatpush1.msra.mxu0 %v741
  %1178 = vmatprep.subr.mxu0 0.0
  %1179 = vmatpush1.msra.mxu0 %v740
  %1180 = vmatprep.subr.mxu0 0.0
  %1181 = vmatpush2.msra.mxu0 0.0
  %1182 = vmatprep.subr.mxu0 0.0
  %1183 = vmatpush2.msra.mxu0 0.0
  %1184 = vmatprep.subr.mxu0 0.0
  %1185 = vmatpush2.msra.mxu0 0.0
  %1186 = vmatprep.subr.mxu0 0.0
  %1187 = vmatpush2.msra.mxu0 0.0
  %1188 = vmatprep.subr.mxu0 0.0
  %1189 = vmatpush2.msra.mxu0 0.0
  %1190 = vmatprep.subr.mxu0 0.0
  %1191 = vmatpush2.msra.mxu0 0.0
  %1192 = vmatprep.subr.mxu0 0.0
  %1193 = vmatpush2.msra.mxu0 0.0
  %1194 = vmatprep.subr.mxu0 0.0
  %1195 = vmatpush2.msra.mxu0 0.0
  %1196 = vmatprep.subr.mxu0 0.0
  %1197 = vmatpush2.msra.mxu0 0.0
  %1198 = vmatprep.subr.mxu0 0.0
  %1199 = vmatpush2.msra.mxu0 0.0
  %1200 = vmatprep.subr.mxu0 0.0
  %1201 = vmatpush2.msra.mxu0 0.0
  %1202 = vmatprep.subr.mxu0 0.0
  %1203 = vmatpush2.msra.mxu0 0.0
  %1204 = vmatprep.subr.mxu0 0.0
  %1205 = vmatpush2.msra.mxu0 0.0
  %1206 = vmatprep.subr.mxu0 0.0
  %1207 = vmatpush2.msra.mxu0 0.0
  %1208 = vmatprep.subr.mxu0 0.0
  %1209 = vmatpush2.msra.mxu0 0.0
  %1210 = vmatprep.subr.mxu0 0.0
  %1211 = vmatpush2.msra.mxu0 0.0
  %1212 = vmatprep.mubr.f32.mxu0 0.0
  %1213 = vmatmul.mubr.f32.gmra.mxu0 %v668
  %v1214 = vpop.f32.mrf.mxu0
  %v1215 = vadd.f32 0.0, %v1214
  %v1216 = vpop.f32.mrf.mxu0
  %1217 = vdwg.mxu0
  %1218 = vmatprep.subr.mxu0 0.0
  %1219 = vmatpush1.msra.mxu0 %v771
  %1220 = vmatprep.subr.mxu0 0.0
  %1221 = vmatpush1.msra.mxu0 %v770
  %1222 = vmatprep.subr.mxu0 0.0
  %1223 = vmatpush1.msra.mxu0 %v769
  %1224 = vmatprep.subr.mxu0 0.0
  %1225 = vmatpush1.msra.mxu0 %v768
  %1226 = vmatprep.subr.mxu0 0.0
  %1227 = vmatpush1.msra.mxu0 %v767
  %1228 = vmatprep.subr.mxu0 0.0
  %1229 = vmatpush1.msra.mxu0 %v766
  %1230 = vmatprep.subr.mxu0 0.0
  %1231 = vmatpush1.msra.mxu0 %v765
  %1232 = vmatprep.subr.mxu0 0.0
  %1233 = vmatpush1.msra.mxu0 %v764
  %1234 = vmatprep.subr.mxu0 0.0
  %1235 = vmatpush1.msra.mxu0 %v763
  %1236 = vmatprep.subr.mxu0 0.0
  %1237 = vmatpush1.msra.mxu0 %v762
  %1238 = vmatprep.subr.mxu0 0.0
  %1239 = vmatpush1.msra.mxu0 %v761
  %1240 = vmatprep.subr.mxu0 0.0
  %1241 = vmatpush1.msra.mxu0 %v760
  %1242 = vmatprep.subr.mxu0 0.0
  %1243 = vmatpush1.msra.mxu0 %v759
  %1244 = vmatprep.subr.mxu0 0.0
  %1245 = vmatpush1.msra.mxu0 %v758
  %1246 = vmatprep.subr.mxu0 0.0
  %1247 = vmatpush1.msra.mxu0 %v757
  %1248 = vmatprep.subr.mxu0 0.0
  %1249 = vmatpush1.msra.mxu0 %v756
  %1250 = vmatprep.subr.mxu0 0.0
  %1251 = vmatpush2.msra.mxu0 0.0
  %1252 = vmatprep.subr.mxu0 0.0
  %1253 = vmatpush2.msra.mxu0 0.0
  %1254 = vmatprep.subr.mxu0 0.0
  %1255 = vmatpush2.msra.mxu0 0.0
  %1256 = vmatprep.subr.mxu0 0.0
  %1257 = vmatpush2.msra.mxu0 0.0
  %1258 = vmatprep.subr.mxu0 0.0
  %1259 = vmatpush2.msra.mxu0 0.0
  %1260 = vmatprep.subr.mxu0 0.0
  %1261 = vmatpush2.msra.mxu0 0.0
  %1262 = vmatprep.subr.mxu0 0.0
  %1263 = vmatpush2.msra.mxu0 0.0
  %1264 = vmatprep.subr.mxu0 0.0
  %1265 = vmatpush2.msra.mxu0 0.0
  %1266 = vmatprep.subr.mxu0 0.0
  %1267 = vmatpush2.msra.mxu0 0.0
  %1268 = vmatprep.subr.mxu0 0.0
  %1269 = vmatpush2.msra.mxu0 0.0
  %1270 = vmatprep.subr.mxu0 0.0
  %1271 = vmatpush2.msra.mxu0 0.0
  %1272 = vmatprep.subr.mxu0 0.0
  %1273 = vmatpush2.msra.mxu0 0.0
  %1274 = vmatprep.subr.mxu0 0.0
  %1275 = vmatpush2.msra.mxu0 0.0
  %1276 = vmatprep.subr.mxu0 0.0
  %1277 = vmatpush2.msra.mxu0 0.0
  %1278 = vmatprep.subr.mxu0 0.0
  %1279 = vmatpush2.msra.mxu0 0.0
  %1280 = vmatprep.subr.mxu0 0.0
  %1281 = vmatpush2.msra.mxu0 0.0
  %1282 = vmatprep.mubr.f32.mxu0 0.0
  %1283 = vmatmul.mubr.f32.gmra.mxu0 %v669
  %v1284 = vpop.f32.mrf.mxu0
  %v1285 = vadd.f32 0.0, %v1284
  %v1286 = vpop.f32.mrf.mxu0
  %1287 = vdwg.mxu0
  %1288 = vmatprep.subr.mxu0 0.0
  %1289 = vmatpush1.msra.mxu0 %v787
  %1290 = vmatprep.subr.mxu0 0.0
  %1291 = vmatpush1.msra.mxu0 %v786
  %1292 = vmatprep.subr.mxu0 0.0
  %1293 = vmatpush1.msra.mxu0 %v785
  %1294 = vmatprep.subr.mxu0 0.0
  %1295 = vmatpush1.msra.mxu0 %v784
  %1296 = vmatprep.subr.mxu0 0.0
  %1297 = vmatpush1.msra.mxu0 %v783
  %1298 = vmatprep.subr.mxu0 0.0
  %1299 = vmatpush1.msra.mxu0 %v782
  %1300 = vmatprep.subr.mxu0 0.0
  %1301 = vmatpush1.msra.mxu0 %v781
  %1302 = vmatprep.subr.mxu0 0.0
  %1303 = vmatpush1.msra.mxu0 %v780
  %1304 = vmatprep.subr.mxu0 0.0
  %1305 = vmatpush1.msra.mxu0 %v779
  %1306 = vmatprep.subr.mxu0 0.0
  %1307 = vmatpush1.msra.mxu0 %v778
  %1308 = vmatprep.subr.mxu0 0.0
  %1309 = vmatpush1.msra.mxu0 %v777
  %1310 = vmatprep.subr.mxu0 0.0
  %1311 = vmatpush1.msra.mxu0 %v776
  %1312 = vmatprep.subr.mxu0 0.0
  %1313 = vmatpush1.msra.mxu0 %v775
  %1314 = vmatprep.subr.mxu0 0.0
  %1315 = vmatpush1.msra.mxu0 %v774
  %1316 = vmatprep.subr.mxu0 0.0
  %1317 = vmatpush1.msra.mxu0 %v773
  %1318 = vmatprep.subr.mxu0 0.0
  %1319 = vmatpush1.msra.mxu0 %v772
  %1320 = vmatprep.subr.mxu0 0.0
  %1321 = vmatpush2.msra.mxu0 0.0
  %1322 = vmatprep.subr.mxu0 0.0
  %1323 = vmatpush2.msra.mxu0 0.0
  %1324 = vmatprep.subr.mxu0 0.0
  %1325 = vmatpush2.msra.mxu0 0.0
  %1326 = vmatprep.subr.mxu0 0.0
  %1327 = vmatpush2.msra.mxu0 0.0
  %1328 = vmatprep.subr.mxu0 0.0
  %1329 = vmatpush2.msra.mxu0 0.0
  %1330 = vmatprep.subr.mxu0 0.0
  %1331 = vmatpush2.msra.mxu0 0.0
  %1332 = vmatprep.subr.mxu0 0.0
  %1333 = vmatpush2.msra.mxu0 0.0
  %1334 = vmatprep.subr.mxu0 0.0
  %1335 = vmatpush2.msra.mxu0 0.0
  %1336 = vmatprep.subr.mxu0 0.0
  %1337 = vmatpush2.msra.mxu0 0.0
  %1338 = vmatprep.subr.mxu0 0.0
  %1339 = vmatpush2.msra.mxu0 0.0
  %1340 = vmatprep.subr.mxu0 0.0
  %1341 = vmatpush2.msra.mxu0 0.0
  %1342 = vmatprep.subr.mxu0 0.0
  %1343 = vmatpush2.msra.mxu0 0.0
  %1344 = vmatprep.subr.mxu0 0.0
  %1345 = vmatpush2.msra.mxu0 0.0
  %1346 = vmatprep.subr.mxu0 0.0
  %1347 = vmatpush2.msra.mxu0 0.0
  %1348 = vmatprep.subr.mxu0 0.0
  %1349 = vmatpush2.msra.mxu0 0.0
  %1350 = vmatprep.subr.mxu0 0.0
  %1351 = vmatpush2.msra.mxu0 0.0
  %1352 = vmatprep.mubr.f32.mxu0 0.0
  %1353 = vmatmul.mubr.f32.gmra.mxu0 %v670
  %v1354 = vpop.f32.mrf.mxu0
  %v1355 = vadd.f32 0.0, %v1354
  %v1356 = vpop.f32.mrf.mxu0
  %1357 = vdwg.mxu0
  %1358 = vmatprep.subr.mxu0 0.0
  %1359 = vmatpush1.msra.mxu0 %v803
  %1360 = vmatprep.subr.mxu0 0.0
  %1361 = vmatpush1.msra.mxu0 %v802
  %1362 = vmatprep.subr.mxu0 0.0
  %1363 = vmatpush1.msra.mxu0 %v801
  %1364 = vmatprep.subr.mxu0 0.0
  %1365 = vmatpush1.msra.mxu0 %v800
  %1366 = vmatprep.subr.mxu0 0.0
  %1367 = vmatpush1.msra.mxu0 %v799
  %1368 = vmatprep.subr.mxu0 0.0
  %1369 = vmatpush1.msra.mxu0 %v798
  %1370 = vmatprep.subr.mxu0 0.0
  %1371 = vmatpush1.msra.mxu0 %v797
  %1372 = vmatprep.subr.mxu0 0.0
  %1373 = vmatpush1.msra.mxu0 %v796
  %1374 = vmatprep.subr.mxu0 0.0
  %1375 = vmatpush1.msra.mxu0 %v795
  %1376 = vmatprep.subr.mxu0 0.0
  %1377 = vmatpush1.msra.mxu0 %v794
  %1378 = vmatprep.subr.mxu0 0.0
  %1379 = vmatpush1.msra.mxu0 %v793
  %1380 = vmatprep.subr.mxu0 0.0
  %1381 = vmatpush1.msra.mxu0 %v792
  %1382 = vmatprep.subr.mxu0 0.0
  %1383 = vmatpush1.msra.mxu0 %v791
  %1384 = vmatprep.subr.mxu0 0.0
  %1385 = vmatpush1.msra.mxu0 %v790
  %1386 = vmatprep.subr.mxu0 0.0
  %1387 = vmatpush1.msra.mxu0 %v789
  %1388 = vmatprep.subr.mxu0 0.0
  %1389 = vmatpush1.msra.mxu0 %v788
  %1390 = vmatprep.subr.mxu0 0.0
  %1391 = vmatpush2.msra.mxu0 0.0
  %1392 = vmatprep.subr.mxu0 0.0
  %1393 = vmatpush2.msra.mxu0 0.0
  %1394 = vmatprep.subr.mxu0 0.0
  %1395 = vmatpush2.msra.mxu0 0.0
  %1396 = vmatprep.subr.mxu0 0.0
  %1397 = vmatpush2.msra.mxu0 0.0
  %1398 = vmatprep.subr.mxu0 0.0
  %1399 = vmatpush2.msra.mxu0 0.0
  %1400 = vmatprep.subr.mxu0 0.0
  %1401 = vmatpush2.msra.mxu0 0.0
  %1402 = vmatprep.subr.mxu0 0.0
  %1403 = vmatpush2.msra.mxu0 0.0
  %1404 = vmatprep.subr.mxu0 0.0
  %1405 = vmatpush2.msra.mxu0 0.0
  %1406 = vmatprep.subr.mxu0 0.0
  %1407 = vmatpush2.msra.mxu0 0.0
  %1408 = vmatprep.subr.mxu0 0.0
  %1409 = vmatpush2.msra.mxu0 0.0
  %1410 = vmatprep.subr.mxu0 0.0
  %1411 = vmatpush2.msra.mxu0 0.0
  %1412 = vmatprep.subr.mxu0 0.0
  %1413 = vmatpush2.msra.mxu0 0.0
  %1414 = vmatprep.subr.mxu0 0.0
  %1415 = vmatpush2.msra.mxu0 0.0
  %1416 = vmatprep.subr.mxu0 0.0
  %1417 = vmatpush2.msra.mxu0 0.0
  %1418 = vmatprep.subr.mxu0 0.0
  %1419 = vmatpush2.msra.mxu0 0.0
  %1420 = vmatprep.subr.mxu0 0.0
  %1421 = vmatpush2.msra.mxu0 0.0
  %1422 = vmatprep.mubr.f32.mxu0 0.0
  %1423 = vmatmul.mubr.f32.gmra.mxu0 %v671
  %v1424 = vpop.f32.mrf.mxu0
  %v1425 = vadd.f32 0.0, %v1424
  %v1426 = vpop.f32.mrf.mxu0
  %1427 = vdwg.mxu0
  %1428 = vmatprep.subr.mxu0 0.0
  %1429 = vmatpush1.msra.mxu0 %v819
  %1430 = vmatprep.subr.mxu0 0.0
  %1431 = vmatpush1.msra.mxu0 %v818
  %1432 = vmatprep.subr.mxu0 0.0
  %1433 = vmatpush1.msra.mxu0 %v817
  %1434 = vmatprep.subr.mxu0 0.0
  %1435 = vmatpush1.msra.mxu0 %v816
  %1436 = vmatprep.subr.mxu0 0.0
  %1437 = vmatpush1.msra.mxu0 %v815
  %1438 = vmatprep.subr.mxu0 0.0
  %1439 = vmatpush1.msra.mxu0 %v814
  %1440 = vmatprep.subr.mxu0 0.0
  %1441 = vmatpush1.msra.mxu0 %v813
  %1442 = vmatprep.subr.mxu0 0.0
  %1443 = vmatpush1.msra.mxu0 %v812
  %1444 = vmatprep.subr.mxu0 0.0
  %1445 = vmatpush1.msra.mxu0 %v811
  %1446 = vmatprep.subr.mxu0 0.0
  %1447 = vmatpush1.msra.mxu0 %v810
  %1448 = vmatprep.subr.mxu0 0.0
  %1449 = vmatpush1.msra.mxu0 %v809
  %1450 = vmatprep.subr.mxu0 0.0
  %1451 = vmatpush1.msra.mxu0 %v808
  %1452 = vmatprep.subr.mxu0 0.0
  %1453 = vmatpush1.msra.mxu0 %v807
  %1454 = vmatprep.subr.mxu0 0.0
  %1455 = vmatpush1.msra.mxu0 %v806
  %1456 = vmatprep.subr.mxu0 0.0
  %1457 = vmatpush1.msra.mxu0 %v805
  %1458 = vmatprep.subr.mxu0 0.0
  %1459 = vmatpush1.msra.mxu0 %v804
  %1460 = vmatprep.subr.mxu0 0.0
  %1461 = vmatpush2.msra.mxu0 0.0
  %1462 = vmatprep.subr.mxu0 0.0
  %1463 = vmatpush2.msra.mxu0 0.0
  %1464 = vmatprep.subr.mxu0 0.0
  %1465 = vmatpush2.msra.mxu0 0.0
  %1466 = vmatprep.subr.mxu0 0.0
  %1467 = vmatpush2.msra.mxu0 0.0
  %1468 = vmatprep.subr.mxu0 0.0
  %1469 = vmatpush2.msra.mxu0 0.0
  %1470 = vmatprep.subr.mxu0 0.0
  %1471 = vmatpush2.msra.mxu0 0.0
  %1472 = vmatprep.subr.mxu0 0.0
  %1473 = vmatpush2.msra.mxu0 0.0
  %1474 = vmatprep.subr.mxu0 0.0
  %1475 = vmatpush2.msra.mxu0 0.0
  %1476 = vmatprep.subr.mxu0 0.0
  %1477 = vmatpush2.msra.mxu0 0.0
  %1478 = vmatprep.subr.mxu0 0.0
  %1479 = vmatpush2.msra.mxu0 0.0
  %1480 = vmatprep.subr.mxu0 0.0
  %1481 = vmatpush2.msra.mxu0 0.0
  %1482 = vmatprep.subr.mxu0 0.0
  %1483 = vmatpush2.msra.mxu0 0.0
  %1484 = vmatprep.subr.mxu0 0.0
  %1485 = vmatpush2.msra.mxu0 0.0
  %1486 = vmatprep.subr.mxu0 0.0
  %1487 = vmatpush2.msra.mxu0 0.0
  %1488 = vmatprep.subr.mxu0 0.0
  %1489 = vmatpush2.msra.mxu0 0.0
  %1490 = vmatprep.subr.mxu0 0.0
  %1491 = vmatpush2.msra.mxu0 0.0
  %1492 = vmatprep.mubr.f32.mxu0 0.0
  %1493 = vmatmul.mubr.f32.gmra.mxu0 %v672
  %v1494 = vpop.f32.mrf.mxu0
  %v1495 = vadd.f32 0.0, %v1494
  %v1496 = vpop.f32.mrf.mxu0
  %1497 = vdwg.mxu0
  %1498 = vmatprep.subr.mxu0 0.0
  %1499 = vmatpush1.msra.mxu0 %v835
  %1500 = vmatprep.subr.mxu0 0.0
  %1501 = vmatpush1.msra.mxu0 %v834
  %1502 = vmatprep.subr.mxu0 0.0
  %1503 = vmatpush1.msra.mxu0 %v833
  %1504 = vmatprep.subr.mxu0 0.0
  %1505 = vmatpush1.msra.mxu0 %v832
  %1506 = vmatprep.subr.mxu0 0.0
  %1507 = vmatpush1.msra.mxu0 %v831
  %1508 = vmatprep.subr.mxu0 0.0
  %1509 = vmatpush1.msra.mxu0 %v830
  %1510 = vmatprep.subr.mxu0 0.0
  %1511 = vmatpush1.msra.mxu0 %v829
  %1512 = vmatprep.subr.mxu0 0.0
  %1513 = vmatpush1.msra.mxu0 %v828
  %1514 = vmatprep.subr.mxu0 0.0
  %1515 = vmatpush1.msra.mxu0 %v827
  %1516 = vmatprep.subr.mxu0 0.0
  %1517 = vmatpush1.msra.mxu0 %v826
  %1518 = vmatprep.subr.mxu0 0.0
  %1519 = vmatpush1.msra.mxu0 %v825
  %1520 = vmatprep.subr.mxu0 0.0
  %1521 = vmatpush1.msra.mxu0 %v824
  %1522 = vmatprep.subr.mxu0 0.0
  %1523 = vmatpush1.msra.mxu0 %v823
  %1524 = vmatprep.subr.mxu0 0.0
  %1525 = vmatpush1.msra.mxu0 %v822
  %1526 = vmatprep.subr.mxu0 0.0
  %1527 = vmatpush1.msra.mxu0 %v821
  %1528 = vmatprep.subr.mxu0 0.0
  %1529 = vmatpush1.msra.mxu0 %v820
  %1530 = vmatprep.subr.mxu0 0.0
  %1531 = vmatpush2.msra.mxu0 0.0
  %1532 = vmatprep.subr.mxu0 0.0
  %1533 = vmatpush2.msra.mxu0 0.0
  %1534 = vmatprep.subr.mxu0 0.0
  %1535 = vmatpush2.msra.mxu0 0.0
  %1536 = vmatprep.subr.mxu0 0.0
  %1537 = vmatpush2.msra.mxu0 0.0
  %1538 = vmatprep.subr.mxu0 0.0
  %1539 = vmatpush2.msra.mxu0 0.0
  %1540 = vmatprep.subr.mxu0 0.0
  %1541 = vmatpush2.msra.mxu0 0.0
  %1542 = vmatprep.subr.mxu0 0.0
  %1543 = vmatpush2.msra.mxu0 0.0
  %1544 = vmatprep.subr.mxu0 0.0
  %1545 = vmatpush2.msra.mxu0 0.0
  %1546 = vmatprep.subr.mxu0 0.0
  %1547 = vmatpush2.msra.mxu0 0.0
  %1548 = vmatprep.subr.mxu0 0.0
  %1549 = vmatpush2.msra.mxu0 0.0
  %1550 = vmatprep.subr.mxu0 0.0
  %1551 = vmatpush2.msra.mxu0 0.0
  %1552 = vmatprep.subr.mxu0 0.0
  %1553 = vmatpush2.msra.mxu0 0.0
  %1554 = vmatprep.subr.mxu0 0.0
  %1555 = vmatpush2.msra.mxu0 0.0
  %1556 = vmatprep.subr.mxu0 0.0
  %1557 = vmatpush2.msra.mxu0 0.0
  %1558 = vmatprep.subr.mxu0 0.0
  %1559 = vmatpush2.msra.mxu0 0.0
  %1560 = vmatprep.subr.mxu0 0.0
  %1561 = vmatpush2.msra.mxu0 0.0
  %1562 = vmatprep.mubr.f32.mxu0 0.0
  %1563 = vmatmul.mubr.f32.gmra.mxu0 %v673
  %v1564 = vpop.f32.mrf.mxu0
  %v1565 = vadd.f32 0.0, %v1564
  %v1566 = vpop.f32.mrf.mxu0
  %1567 = vdwg.mxu0
  %1568 = vmatprep.subr.mxu0 0.0
  %1569 = vmatpush1.msra.mxu0 %v851
  %1570 = vmatprep.subr.mxu0 0.0
  %1571 = vmatpush1.msra.mxu0 %v850
  %1572 = vmatprep.subr.mxu0 0.0
  %1573 = vmatpush1.msra.mxu0 %v849
  %1574 = vmatprep.subr.mxu0 0.0
  %1575 = vmatpush1.msra.mxu0 %v848
  %1576 = vmatprep.subr.mxu0 0.0
  %1577 = vmatpush1.msra.mxu0 %v847
  %1578 = vmatprep.subr.mxu0 0.0
  %1579 = vmatpush1.msra.mxu0 %v846
  %1580 = vmatprep.subr.mxu0 0.0
  %1581 = vmatpush1.msra.mxu0 %v845
  %1582 = vmatprep.subr.mxu0 0.0
  %1583 = vmatpush1.msra.mxu0 %v844
  %1584 = vmatprep.subr.mxu0 0.0
  %1585 = vmatpush1.msra.mxu0 %v843
  %1586 = vmatprep.subr.mxu0 0.0
  %1587 = vmatpush1.msra.mxu0 %v842
  %1588 = vmatprep.subr.mxu0 0.0
  %1589 = vmatpush1.msra.mxu0 %v841
  %1590 = vmatprep.subr.mxu0 0.0
  %1591 = vmatpush1.msra.mxu0 %v840
  %1592 = vmatprep.subr.mxu0 0.0
  %1593 = vmatpush1.msra.mxu0 %v839
  %1594 = vmatprep.subr.mxu0 0.0
  %1595 = vmatpush1.msra.mxu0 %v838
  %1596 = vmatprep.subr.mxu0 0.0
  %1597 = vmatpush1.msra.mxu0 %v837
  %1598 = vmatprep.subr.mxu0 0.0
  %1599 = vmatpush1.msra.mxu0 %v836
  %1600 = vmatprep.subr.mxu0 0.0
  %1601 = vmatpush2.msra.mxu0 0.0
  %1602 = vmatprep.subr.mxu0 0.0
  %1603 = vmatpush2.msra.mxu0 0.0
  %1604 = vmatprep.subr.mxu0 0.0
  %1605 = vmatpush2.msra.mxu0 0.0
  %1606 = vmatprep.subr.mxu0 0.0
  %1607 = vmatpush2.msra.mxu0 0.0
  %1608 = vmatprep.subr.mxu0 0.0
  %1609 = vmatpush2.msra.mxu0 0.0
  %1610 = vmatprep.subr.mxu0 0.0
  %1611 = vmatpush2.msra.mxu0 0.0
  %1612 = vmatprep.subr.mxu0 0.0
  %1613 = vmatpush2.msra.mxu0 0.0
  %1614 = vmatprep.subr.mxu0 0.0
  %1615 = vmatpush2.msra.mxu0 0.0
  %1616 = vmatprep.subr.mxu0 0.0
  %1617 = vmatpush2.msra.mxu0 0.0
  %1618 = vmatprep.subr.mxu0 0.0
  %1619 = vmatpush2.msra.mxu0 0.0
  %1620 = vmatprep.subr.mxu0 0.0
  %1621 = vmatpush2.msra.mxu0 0.0
  %1622 = vmatprep.subr.mxu0 0.0
  %1623 = vmatpush2.msra.mxu0 0.0
  %1624 = vmatprep.subr.mxu0 0.0
  %1625 = vmatpush2.msra.mxu0 0.0
  %1626 = vmatprep.subr.mxu0 0.0
  %1627 = vmatpush2.msra.mxu0 0.0
  %1628 = vmatprep.subr.mxu0 0.0
  %1629 = vmatpush2.msra.mxu0 0.0
  %1630 = vmatprep.subr.mxu0 0.0
  %1631 = vmatpush2.msra.mxu0 0.0
  %1632 = vmatprep.mubr.f32.mxu0 0.0
  %1633 = vmatmul.mubr.f32.gmra.mxu0 %v674
  %v1634 = vpop.f32.mrf.mxu0
  %v1635 = vadd.f32 0.0, %v1634
  %v1636 = vpop.f32.mrf.mxu0
  %1637 = vdwg.mxu0
  %1638 = vmatprep.subr.mxu0 0.0
  %1639 = vmatpush1.msra.mxu0 %v867
  %1640 = vmatprep.subr.mxu0 0.0
  %1641 = vmatpush1.msra.mxu0 %v866
  %1642 = vmatprep.subr.mxu0 0.0
  %1643 = vmatpush1.msra.mxu0 %v865
  %1644 = vmatprep.subr.mxu0 0.0
  %1645 = vmatpush1.msra.mxu0 %v864
  %1646 = vmatprep.subr.mxu0 0.0
  %1647 = vmatpush1.msra.mxu0 %v863
  %1648 = vmatprep.subr.mxu0 0.0
  %1649 = vmatpush1.msra.mxu0 %v862
  %1650 = vmatprep.subr.mxu0 0.0
  %1651 = vmatpush1.msra.mxu0 %v861
  %1652 = vmatprep.subr.mxu0 0.0
  %1653 = vmatpush1.msra.mxu0 %v860
  %1654 = vmatprep.subr.mxu0 0.0
  %1655 = vmatpush1.msra.mxu0 %v859
  %1656 = vmatprep.subr.mxu0 0.0
  %1657 = vmatpush1.msra.mxu0 %v858
  %1658 = vmatprep.subr.mxu0 0.0
  %1659 = vmatpush1.msra.mxu0 %v857
  %1660 = vmatprep.subr.mxu0 0.0
  %1661 = vmatpush1.msra.mxu0 %v856
  %1662 = vmatprep.subr.mxu0 0.0
  %1663 = vmatpush1.msra.mxu0 %v855
  %1664 = vmatprep.subr.mxu0 0.0
  %1665 = vmatpush1.msra.mxu0 %v854
  %1666 = vmatprep.subr.mxu0 0.0
  %1667 = vmatpush1.msra.mxu0 %v853
  %1668 = vmatprep.subr.mxu0 0.0
  %1669 = vmatpush1.msra.mxu0 %v852
  %1670 = vmatprep.subr.mxu0 0.0
  %1671 = vmatpush2.msra.mxu0 0.0
  %1672 = vmatprep.subr.mxu0 0.0
  %1673 = vmatpush2.msra.mxu0 0.0
  %1674 = vmatprep.subr.mxu0 0.0
  %1675 = vmatpush2.msra.mxu0 0.0
  %1676 = vmatprep.subr.mxu0 0.0
  %1677 = vmatpush2.msra.mxu0 0.0
  %1678 = vmatprep.subr.mxu0 0.0
  %1679 = vmatpush2.msra.mxu0 0.0
  %1680 = vmatprep.subr.mxu0 0.0
  %1681 = vmatpush2.msra.mxu0 0.0
  %1682 = vmatprep.subr.mxu0 0.0
  %1683 = vmatpush2.msra.mxu0 0.0
  %1684 = vmatprep.subr.mxu0 0.0
  %1685 = vmatpush2.msra.mxu0 0.0
  %1686 = vmatprep.subr.mxu0 0.0
  %1687 = vmatpush2.msra.mxu0 0.0
  %1688 = vmatprep.subr.mxu0 0.0
  %1689 = vmatpush2.msra.mxu0 0.0
  %1690 = vmatprep.subr.mxu0 0.0
  %1691 = vmatpush2.msra.mxu0 0.0
  %1692 = vmatprep.subr.mxu0 0.0
  %1693 = vmatpush2.msra.mxu0 0.0
  %1694 = vmatprep.subr.mxu0 0.0
  %1695 = vmatpush2.msra.mxu0 0.0
  %1696 = vmatprep.subr.mxu0 0.0
  %1697 = vmatpush2.msra.mxu0 0.0
  %1698 = vmatprep.subr.mxu0 0.0
  %1699 = vmatpush2.msra.mxu0 0.0
  %1700 = vmatprep.subr.mxu0 0.0
  %1701 = vmatpush2.msra.mxu0 0.0
  %1702 = vmatprep.mubr.f32.mxu0 0.0
  %1703 = vmatmul.mubr.f32.gmra.mxu0 %v675
  %v1704 = vpop.f32.mrf.mxu0
  %v1705 = vadd.f32 0.0, %v1704
  %v1706 = vpop.f32.mrf.mxu0
  %1707 = vdwg.mxu0
  %v1708 = vadd.f32 %v935, %v1005
  %v1709 = vadd.f32 %v1708, %v1075
  %v1710 = vadd.f32 %v1709, %v1145
  %v1711 = vadd.f32 %v1710, %v1215
  %v1712 = vadd.f32 %v1711, %v1285
  %v1713 = vadd.f32 %v1712, %v1355
  %v1714 = vadd.f32 %v1713, %v1425
  %v1715 = vadd.f32 %v1714, %v1495
  %v1716 = vadd.f32 %v1715, %v1565
  %v1717 = vadd.f32 %v1716, %v1635
  %v1718 = vadd.f32 %v1717, %v1705
  %v1719 = vld [vmem:[%s6] sm:$0x1]
  %v1721 = vlaneseq
  %v1722 = vshrl.u32 %v1721, 7
  %v1723 = vsub.s32 0, %v1722
  %v1724 = vrot.slane %v1719, %v1723
  %v1726 = vadd.f32 %v1718, %v1724
  %v1727 = vmax.f32 %v1726, 0.0
  %v1728 = vlaneseq
  %v1729 = vand.u32 %v1728, 127
  %vm1730 = vcmp.lt.s32.totalorder %v1729, 10
  %v1731 = vsel %vm1730, %v1727, -1e+30
  %1732 = vmax.xlane.f32.xlu0 %v1731
  %v1733 = vpop.xlane.xlu0 %1732
  %v1734 = vsub.f32 %v1731, %v1733
  %v1735 = vmul.f32 %v1734, 1.442695
  %v1736 = vpow.pop %v1735
  %1737 = vadd.xlane.f32.xlu0 %v1736
  %v1738 = vpop.xlane.xlu0 %1737
  %v1739 = vlog2.pop %v1738
  %v1740 = vmul.f32 %v1739, 0.6931472
  %v1741 = vsub.f32 %v1727, %v1733
  %v1742 = vsub.f32 %v1741, %v1740
  %v1743 = vsel %vm1730, %v1742, 0.0
  %1744 = vst [vmem:[%s7] sm:$0xff] %v1743
  // Predicated region
  $region30: #{forward.1} parent=0 // pred_check
    _
  $region31: #{forward.1} parent=0 // pred_check_branch
    %1746 = sbr.rel (0) target = $region33
  $region32: #{forward.1} parent=0 // pred_region
    _
  $region33: #{forward.1} parent=0 // pred_fallthru
    _
  // Predicated region
  $region34: #{forward.1} parent=0 // pred_check
    _
  $region35: #{forward.1} parent=0 // pred_check_branch
    %1748 = sbr.rel (0) target = $region37
  $region36: #{forward.1} parent=0 // pred_region
    _
  $region37: #{forward.1} parent=0 // pred_fallthru
    _

</llo_original>
